<compile_context>
chip_gen: v7x
topology: tpu7x:2x2x1
jax: 0.10.0
libtpu: 0.0.40
codegen_flags: <defaults>
</compile_context>

<pallas_src>
import functools

import jax
import jax.numpy as jnp
from jax import lax
from jax.experimental import pallas as pl
from jax.experimental.pallas import tpu as pltpu

DROP_P = 0.1


def _hash_u32(h):
    """Murmur3-style 32-bit finalizer (good avalanche, pure VPU int ops)."""
    h = h ^ (h >> 16)
    h = h * jnp.uint32(0x7FEB352D)
    h = h ^ (h >> 15)
    h = h * jnp.uint32(0x846CA68B)
    h = h ^ (h >> 16)
    return h


def _softmax_dropout_kernel(seed_ref, x_ref, o_ref, *, apply_dropout: bool,
                            drop_p: float):
    # x_ref / o_ref block: (TR, S2) -- softmax over the last (lane) axis.
    x = x_ref[...].astype(jnp.float32)
    m = jnp.max(x, axis=-1, keepdims=True)
    e = jnp.exp(x - m)
    s = jnp.sum(e, axis=-1, keepdims=True)
    inv = 1.0 / s                      # one divide per row (not per element)
    probs = e * inv

    if apply_dropout:
        tr, s2 = probs.shape
        # Global element id -> deterministic per-element hash.
        r = lax.broadcasted_iota(jnp.uint32, (tr, s2), 0)
        c = lax.broadcasted_iota(jnp.uint32, (tr, s2), 1)
        row0 = (pl.program_id(0) * tr).astype(jnp.uint32)
        gid = (r + row0) * jnp.uint32(s2) + c
        seed_u = seed_ref[0].astype(jnp.uint32) * jnp.uint32(0x9E3779B9)
        h = _hash_u32(gid + seed_u)
        # 24-bit uniform value; integer threshold compare (no float convert).
        u = (h & jnp.uint32(0xFFFFFF)).astype(jnp.int32)
        thresh = jnp.int32(int(drop_p * (1 << 24)))
        keep = u >= thresh
        probs = jnp.where(keep, probs * (1.0 / (1.0 - drop_p)), 0.0)

    o_ref[...] = probs.astype(o_ref.dtype)


def _pick_row_tile(rows: int, row_tile: int) -> int:
    """Largest multiple of 8 <= row_tile that divides rows (else full rows)."""
    cand = (min(row_tile, rows) // 8) * 8
    while cand >= 8:
        if rows % cand == 0:
            return cand
        cand -= 8
    return rows  # full-array block is always a legal block shape


def softmax_dropout(x, seed: int = 0, training: bool = True,
                    row_tile: int = 512):
    """x: [..., S2] float array. Returns dropout(softmax(x, axis=-1))."""
    orig_shape = x.shape
    s2 = orig_shape[-1]
    rows = 1
    for d in orig_shape[:-1]:
        rows *= d
    xr = x.reshape(rows, s2)

    tr = _pick_row_tile(rows, row_tile)
    grid = (rows // tr,)

    seed_arr = jnp.array([seed], dtype=jnp.int32)
    kernel = functools.partial(_softmax_dropout_kernel,
                               apply_dropout=training, drop_p=DROP_P)

    # Enough VMEM for double-buffered in + out blocks (+ headroom), capped
    # well under v7x's 64 MiB physical VMEM.
    block_bytes = tr * s2 * x.dtype.itemsize
    vmem_limit = min(48 * 1024 * 1024, max(16 * 1024 * 1024, 8 * block_bytes))

    out = pl.pallas_call(
        kernel,
        out_shape=jax.ShapeDtypeStruct((rows, s2), x.dtype),
        grid_spec=pltpu.PrefetchScalarGridSpec(
            num_scalar_prefetch=1,
            grid=grid,
            in_specs=[
                pl.BlockSpec((tr, s2), lambda i, seed: (i, 0)),
            ],
            out_specs=pl.BlockSpec((tr, s2), lambda i, seed: (i, 0)),
        ),
        compiler_params=pltpu.CompilerParams(
            dimension_semantics=("parallel",),
            vmem_limit_bytes=vmem_limit,
        ),
    )(seed_arr, xr)

    return out.reshape(orig_shape)


if __name__ == "__main__":
    # Original module uses [1, 4, 384, 384]; use a smaller consistent shape.
    B, H, S = 1, 4, 128
    key = jax.random.PRNGKey(0)
    x = jax.random.normal(key, (B, H, S, S), dtype=jnp.float32)

    # Module default is training mode -> dropout active.
    y = softmax_dropout(x, seed=0, training=True)
    y = jax.block_until_ready(y)

    # Eval mode (dropout = identity) must match plain softmax.
    y_eval = softmax_dropout(x, seed=0, training=False)
    y_eval = jax.block_until_ready(y_eval)
    ref = jax.nn.softmax(x, axis=-1)
    assert jnp.allclose(y_eval, ref, atol=1e-5, rtol=1e-5)
    assert bool(jnp.all(jnp.isfinite(y)))

    # Training mode: entries are either 0 or softmax(x)/(1-p).
    scaled = ref / (1.0 - DROP_P)
    assert bool(jnp.all((y == 0) | jnp.isclose(y, scaled, atol=1e-5)))
    drop_frac = float(jnp.mean((y == 0).astype(jnp.float32)))
    assert 0.05 < drop_frac < 0.15, f"unexpected drop fraction {drop_frac}"

    print("KERNEL_OK")
</pallas_src>

<mosaic_0001>
module attributes {stable_mosaic.version = 11 : i64} {
  func.func @_softmax_dropout_kernel(%arg0: i32, %arg1: memref<1xi32, #tpu.memory_space<smem>>, %arg2: memref<512x128xf32, #tpu.memory_space<vmem>>, %arg3: memref<512x128xf32, #tpu.memory_space<vmem>>) attributes {dimension_semantics = [#tpu.dimension_semantics<parallel>], iteration_bounds = array<i64: 1>, scalar_prefetch = 1 : i64, scratch_operands = 0 : i64, tpu.core_type = #tpu.core_type<tc>, window_params = [{transform_indices = @transform_0, window_bounds = array<i64: 512, 128>}, {transform_indices = @transform_1, window_bounds = array<i64: 512, 128>}]} {
    %c0 = arith.constant 0 : index
    %c0_0 = arith.constant 0 : index
    %0 = vector.load %arg2[%c0, %c0_0] : memref<512x128xf32, #tpu.memory_space<vmem>>, vector<512x128xf32>
    %cst = arith.constant dense<0xFF800000> : vector<512xf32>
    %1 = vector.multi_reduction <maximumf>, %0, %cst [1] : vector<512x128xf32> to vector<512xf32>
    %2 = vector.shape_cast %1 : vector<512xf32> to vector<512x1xf32>
    %3 = vector.broadcast %2 : vector<512x1xf32> to vector<512x128xf32>
    %4 = arith.subf %0, %3 : vector<512x128xf32>
    %5 = math.exp %4 : vector<512x128xf32>
    %cst_1 = arith.constant dense<0.000000e+00> : vector<512xf32>
    %6 = vector.multi_reduction <add>, %5, %cst_1 [1] : vector<512x128xf32> to vector<512xf32>
    %7 = vector.shape_cast %6 : vector<512xf32> to vector<512x1xf32>
    %cst_2 = arith.constant 1.000000e+00 : f32
    %8 = vector.broadcast %cst_2 : f32 to vector<512x1xf32>
    %9 = arith.divf %8, %7 : vector<512x1xf32>
    %10 = vector.broadcast %9 : vector<512x1xf32> to vector<512x128xf32>
    %11 = arith.mulf %5, %10 : vector<512x128xf32>
    %12 = tpu.iota {dimensions = array<i32: 0>} : vector<512x128xi32>
    %13 = tpu.iota {dimensions = array<i32: 1>} : vector<512x128xi32>
    %c512_i32 = arith.constant 512 : i32
    %14 = arith.muli %arg0, %c512_i32 : i32
    %15 = vector.broadcast %14 : i32 to vector<512x128xi32>
    %16 = arith.addi %12, %15 : vector<512x128xi32>
    %c128_i32 = arith.constant 128 : i32
    %17 = vector.broadcast %c128_i32 : i32 to vector<512x128xi32>
    %18 = arith.muli %16, %17 : vector<512x128xi32>
    %19 = arith.addi %18, %13 : vector<512x128xi32>
    %c0_3 = arith.constant 0 : index
    %20 = memref.load %arg1[%c0_3] : memref<1xi32, #tpu.memory_space<smem>>
    %c-1640531527_i32 = arith.constant -1640531527 : i32
    %21 = arith.muli %20, %c-1640531527_i32 : i32
    %22 = vector.broadcast %21 : i32 to vector<512x128xi32>
    %23 = arith.addi %19, %22 : vector<512x128xi32>
    %c16_i32 = arith.constant 16 : i32
    %24 = vector.broadcast %c16_i32 : i32 to vector<512x128xi32>
    %25 = arith.shrui %23, %24 : vector<512x128xi32>
    %26 = arith.xori %23, %25 : vector<512x128xi32>
    %c2146121005_i32 = arith.constant 2146121005 : i32
    %27 = vector.broadcast %c2146121005_i32 : i32 to vector<512x128xi32>
    %28 = arith.muli %26, %27 : vector<512x128xi32>
    %c15_i32 = arith.constant 15 : i32
    %29 = vector.broadcast %c15_i32 : i32 to vector<512x128xi32>
    %30 = arith.shrui %28, %29 : vector<512x128xi32>
    %31 = arith.xori %28, %30 : vector<512x128xi32>
    %c-2073254261_i32 = arith.constant -2073254261 : i32
    %32 = vector.broadcast %c-2073254261_i32 : i32 to vector<512x128xi32>
    %33 = arith.muli %31, %32 : vector<512x128xi32>
    %c16_i32_4 = arith.constant 16 : i32
    %34 = vector.broadcast %c16_i32_4 : i32 to vector<512x128xi32>
    %35 = arith.shrui %33, %34 : vector<512x128xi32>
    %36 = arith.xori %33, %35 : vector<512x128xi32>
    %c16777215_i32 = arith.constant 16777215 : i32
    %37 = vector.broadcast %c16777215_i32 : i32 to vector<512x128xi32>
    %38 = arith.andi %36, %37 : vector<512x128xi32>
    %c1677721_i32 = arith.constant 1677721 : i32
    %39 = vector.broadcast %c1677721_i32 : i32 to vector<512x128xi32>
    %40 = arith.cmpi sge, %38, %39 : vector<512x128xi32>
    %cst_5 = arith.constant 1.11111116 : f32
    %41 = vector.broadcast %cst_5 : f32 to vector<512x128xf32>
    %42 = arith.mulf %11, %41 : vector<512x128xf32>
    %cst_6 = arith.constant 0.000000e+00 : f32
    %43 = vector.broadcast %cst_6 : f32 to vector<512x128xf32>
    %44 = arith.select %40, %42, %43 : vector<512x128xi1>, vector<512x128xf32>
    %c0_7 = arith.constant 0 : index
    %c0_8 = arith.constant 0 : index
    %45 = vector.load %arg3[%c0_7, %c0_8] : memref<512x128xf32, #tpu.memory_space<vmem>>, vector<512x128xf32>
    tpu.vector_store %arg3[%c0_7, %c0_8], %44 {strides = array<i32>} : memref<512x128xf32, #tpu.memory_space<vmem>>, vector<512x128xf32>,
    return
  }
  func.func @transform_0(%arg0: i32, %arg1: memref<1xi32, #tpu.memory_space<smem>>) -> (i32, i32) {
    %c0_i32 = arith.constant 0 : i32
    %c0_i32_0 = arith.constant 0 : i32
    return %arg0, %c0_i32 : i32, i32
  }
  func.func @transform_1(%arg0: i32, %arg1: memref<1xi32, #tpu.memory_space<smem>>) -> (i32, i32) {
    %c0_i32 = arith.constant 0 : i32
    %c0_i32_0 = arith.constant 0 : i32
    return %arg0, %c0_i32 : i32, i32
  }
}

</mosaic_0001>

<llo_original>
// kernel: tpu_custom_call.1
$region0: #{tpu_custom_call.1}
  #allocation0 [shape = 'u32[]', space=smem, size = 0x4, offset = 0x4, fixed_abs, tag = 'smem constant byte address 0x4 - core index']
  #allocation1 [shape = 'u32[144,128]{1,0:T(1,128)}', space=vmem, size = 0x12000, scoped, tag = 'internal scratch']
  #allocation2 [shape = 's32[1]{0}', space=sflag, size = 0x4, scoped, tag = 'scoped memory for tpu_custom_call.1']
  #allocation3 [shape = 's32[1]{0:T(128)S(6)}', space=smem, size = 0x200, scoped, tag = 'prefetched SMEM operand 0']
  %s0 = inlined_call_operand.<no memory space> [shape: s32[1], index: 0, kind: input, shape index: {}]
  %s1 = inlined_call_operand.hbm [shape: f32[512,128], index: 1, kind: input, shape index: {}]
  %s2 = inlined_call_operand.hbm [shape: f32[512,128], index: 2, kind: output, shape index: {}]
  %s3 = sld [smem:[#allocation0]]
  $region18: #{tpu_custom_call.1} parent=0
    _
  %s5 = ssub.s32 1, %s3
  %s6 = scalar_select 0, %s5, %s3
  %7 = sst [smem:[#allocation3]] %s0
  $region1: #{tpu_custom_call.1} parent=0
    #allocation4 [shape = 'u8[262144]{0}', space=vmem, size = 0x40000, scoped, tag = 'input window, operand 1, single buffered']
    #allocation5 [shape = 's32[1]{0}', space=sflag, size = 0x4, scoped, tag = 'scoped memory for tpu_custom_call.1']
    #allocation6 [shape = 's32[1]{0}', space=sflag, size = 0x4, scoped, tag = 'scoped memory for tpu_custom_call.1']
    #allocation7 [shape = 'u8[262144]{0}', space=vmem, size = 0x40000, scoped, tag = 'output window, operand 0, single buffered']
    %8 = vsyncpa [#allocation5], 0
    %9 = vsyncpa [#allocation6], 0
    // Predicated region
    $region2: #{tpu_custom_call.1} parent=1 // pred_check
      _
    $region3: #{tpu_custom_call.1} parent=1 // pred_check_branch
      %11 = sbr.rel (0) target = $region5
    $region4: #{tpu_custom_call.1} parent=1 // pred_region
      %s13 = ssub.s32 8192, 8192
      %14 = vsyncadd [#allocation5], %s13
      %s15 = sshll.u32 [#allocation4], 4
      %s16 = int_to_ptr.vmem [resolvable:$true] %s15
      %21 = dma.hbm_to_vmem [thread:$0]  %s1, 8192, %s16, [#allocation5], 128, 128, 8
    $region5: #{tpu_custom_call.1} parent=1 // pred_fallthru
      _
    // Predicated region
    $region6: #{tpu_custom_call.1} parent=1 // pred_check
      _
    $region7: #{tpu_custom_call.1} parent=1 // pred_check_branch
      %23 = sbr.rel (0) target = $region9
    $region8: #{tpu_custom_call.1} parent=1 // pred_region
      %24 = dma.done [#allocation5], 8192
    $region9: #{tpu_custom_call.1} parent=1 // pred_fallthru
      _
    %v25 = vld [vmem:[#allocation4] sm:$0xff]
    %v26 = vld [vmem:[#allocation4 + $0x8] sm:$0xff]
    %v27 = vld [vmem:[#allocation4 + $0x10] sm:$0xff]
    %v28 = vld [vmem:[#allocation4 + $0x18] sm:$0xff]
    %v29 = vld [vmem:[#allocation4 + $0x20] sm:$0xff]
    %v30 = vld [vmem:[#allocation4 + $0x28] sm:$0xff]
    %v31 = vld [vmem:[#allocation4 + $0x30] sm:$0xff]
    %v32 = vld [vmem:[#allocation4 + $0x38] sm:$0xff]
    %v33 = vld [vmem:[#allocation4 + $0x40] sm:$0xff]
    %v34 = vld [vmem:[#allocation4 + $0x48] sm:$0xff]
    %v35 = vld [vmem:[#allocation4 + $0x50] sm:$0xff]
    %v36 = vld [vmem:[#allocation4 + $0x58] sm:$0xff]
    %v37 = vld [vmem:[#allocation4 + $0x60] sm:$0xff]
    %v38 = vld [vmem:[#allocation4 + $0x68] sm:$0xff]
    %v39 = vld [vmem:[#allocation4 + $0x70] sm:$0xff]
    %v40 = vld [vmem:[#allocation4 + $0x78] sm:$0xff]
    %v41 = vld [vmem:[#allocation4 + $0x80] sm:$0xff]
    %v42 = vld [vmem:[#allocation4 + $0x88] sm:$0xff]
    %v43 = vld [vmem:[#allocation4 + $0x90] sm:$0xff]
    %v44 = vld [vmem:[#allocation4 + $0x98] sm:$0xff]
    %v45 = vld [vmem:[#allocation4 + $0xa0] sm:$0xff]
    %v46 = vld [vmem:[#allocation4 + $0xa8] sm:$0xff]
    %v47 = vld [vmem:[#allocation4 + $0xb0] sm:$0xff]
    %v48 = vld [vmem:[#allocation4 + $0xb8] sm:$0xff]
    %v49 = vld [vmem:[#allocation4 + $0xc0] sm:$0xff]
    %v50 = vld [vmem:[#allocation4 + $0xc8] sm:$0xff]
    %v51 = vld [vmem:[#allocation4 + $0xd0] sm:$0xff]
    %v52 = vld [vmem:[#allocation4 + $0xd8] sm:$0xff]
    %v53 = vld [vmem:[#allocation4 + $0xe0] sm:$0xff]
    %v54 = vld [vmem:[#allocation4 + $0xe8] sm:$0xff]
    %v55 = vld [vmem:[#allocation4 + $0xf0] sm:$0xff]
    %v56 = vld [vmem:[#allocation4 + $0xf8] sm:$0xff]
    %v57 = vld [vmem:[#allocation4 + $0x100] sm:$0xff]
    %v58 = vld [vmem:[#allocation4 + $0x108] sm:$0xff]
    %v59 = vld [vmem:[#allocation4 + $0x110] sm:$0xff]
    %v60 = vld [vmem:[#allocation4 + $0x118] sm:$0xff]
    %v61 = vld [vmem:[#allocation4 + $0x120] sm:$0xff]
    %v62 = vld [vmem:[#allocation4 + $0x128] sm:$0xff]
    %v63 = vld [vmem:[#allocation4 + $0x130] sm:$0xff]
    %v64 = vld [vmem:[#allocation4 + $0x138] sm:$0xff]
    %v65 = vld [vmem:[#allocation4 + $0x140] sm:$0xff]
    %v66 = vld [vmem:[#allocation4 + $0x148] sm:$0xff]
    %v67 = vld [vmem:[#allocation4 + $0x150] sm:$0xff]
    %v68 = vld [vmem:[#allocation4 + $0x158] sm:$0xff]
    %v69 = vld [vmem:[#allocation4 + $0x160] sm:$0xff]
    %v70 = vld [vmem:[#allocation4 + $0x168] sm:$0xff]
    %v71 = vld [vmem:[#allocation4 + $0x170] sm:$0xff]
    %v72 = vld [vmem:[#allocation4 + $0x178] sm:$0xff]
    %v73 = vld [vmem:[#allocation4 + $0x180] sm:$0xff]
    %v74 = vld [vmem:[#allocation4 + $0x188] sm:$0xff]
    %v75 = vld [vmem:[#allocation4 + $0x190] sm:$0xff]
    %v76 = vld [vmem:[#allocation4 + $0x198] sm:$0xff]
    %v77 = vld [vmem:[#allocation4 + $0x1a0] sm:$0xff]
    %v78 = vld [vmem:[#allocation4 + $0x1a8] sm:$0xff]
    %v79 = vld [vmem:[#allocation4 + $0x1b0] sm:$0xff]
    %v80 = vld [vmem:[#allocation4 + $0x1b8] sm:$0xff]
    %v81 = vld [vmem:[#allocation4 + $0x1c0] sm:$0xff]
    %v82 = vld [vmem:[#allocation4 + $0x1c8] sm:$0xff]
    %v83 = vld [vmem:[#allocation4 + $0x1d0] sm:$0xff]
    %v84 = vld [vmem:[#allocation4 + $0x1d8] sm:$0xff]
    %v85 = vld [vmem:[#allocation4 + $0x1e0] sm:$0xff]
    %v86 = vld [vmem:[#allocation4 + $0x1e8] sm:$0xff]
    %v87 = vld [vmem:[#allocation4 + $0x1f0] sm:$0xff]
    %v88 = vld [vmem:[#allocation4 + $0x1f8] sm:$0xff]
    %89 = vmax.xlane.f32.xlu0 %v25
    %v90 = vpop.xlane.xlu0 %89
    %91 = vmax.xlane.f32.xlu0 %v26
    %v92 = vpop.xlane.xlu0 %91
    %93 = vmax.xlane.f32.xlu0 %v27
    %v94 = vpop.xlane.xlu0 %93
    %95 = vmax.xlane.f32.xlu0 %v28
    %v96 = vpop.xlane.xlu0 %95
    %97 = vmax.xlane.f32.xlu0 %v29
    %v98 = vpop.xlane.xlu0 %97
    %99 = vmax.xlane.f32.xlu0 %v30
    %v100 = vpop.xlane.xlu0 %99
    %101 = vmax.xlane.f32.xlu0 %v31
    %v102 = vpop.xlane.xlu0 %101
    %103 = vmax.xlane.f32.xlu0 %v32
    %v104 = vpop.xlane.xlu0 %103
    %105 = vmax.xlane.f32.xlu0 %v33
    %v106 = vpop.xlane.xlu0 %105
    %107 = vmax.xlane.f32.xlu0 %v34
    %v108 = vpop.xlane.xlu0 %107
    %109 = vmax.xlane.f32.xlu0 %v35
    %v110 = vpop.xlane.xlu0 %109
    %111 = vmax.xlane.f32.xlu0 %v36
    %v112 = vpop.xlane.xlu0 %111
    %113 = vmax.xlane.f32.xlu0 %v37
    %v114 = vpop.xlane.xlu0 %113
    %115 = vmax.xlane.f32.xlu0 %v38
    %v116 = vpop.xlane.xlu0 %115
    %117 = vmax.xlane.f32.xlu0 %v39
    %v118 = vpop.xlane.xlu0 %117
    %119 = vmax.xlane.f32.xlu0 %v40
    %v120 = vpop.xlane.xlu0 %119
    %121 = vmax.xlane.f32.xlu0 %v41
    %v122 = vpop.xlane.xlu0 %121
    %123 = vmax.xlane.f32.xlu0 %v42
    %v124 = vpop.xlane.xlu0 %123
    %125 = vmax.xlane.f32.xlu0 %v43
    %v126 = vpop.xlane.xlu0 %125
    %127 = vmax.xlane.f32.xlu0 %v44
    %v128 = vpop.xlane.xlu0 %127
    %129 = vmax.xlane.f32.xlu0 %v45
    %v130 = vpop.xlane.xlu0 %129
    %131 = vmax.xlane.f32.xlu0 %v46
    %v132 = vpop.xlane.xlu0 %131
    %133 = vmax.xlane.f32.xlu0 %v47
    %v134 = vpop.xlane.xlu0 %133
    %135 = vmax.xlane.f32.xlu0 %v48
    %v136 = vpop.xlane.xlu0 %135
    %137 = vmax.xlane.f32.xlu0 %v49
    %v138 = vpop.xlane.xlu0 %137
    %139 = vmax.xlane.f32.xlu0 %v50
    %v140 = vpop.xlane.xlu0 %139
    %141 = vmax.xlane.f32.xlu0 %v51
    %v142 = vpop.xlane.xlu0 %141
    %143 = vmax.xlane.f32.xlu0 %v52
    %v144 = vpop.xlane.xlu0 %143
    %145 = vmax.xlane.f32.xlu0 %v53
    %v146 = vpop.xlane.xlu0 %145
    %147 = vmax.xlane.f32.xlu0 %v54
    %v148 = vpop.xlane.xlu0 %147
    %149 = vmax.xlane.f32.xlu0 %v55
    %v150 = vpop.xlane.xlu0 %149
    %151 = vmax.xlane.f32.xlu0 %v56
    %v152 = vpop.xlane.xlu0 %151
    %153 = vmax.xlane.f32.xlu0 %v57
    %v154 = vpop.xlane.xlu0 %153
    %155 = vmax.xlane.f32.xlu0 %v58
    %v156 = vpop.xlane.xlu0 %155
    %157 = vmax.xlane.f32.xlu0 %v59
    %v158 = vpop.xlane.xlu0 %157
    %159 = vmax.xlane.f32.xlu0 %v60
    %v160 = vpop.xlane.xlu0 %159
    %161 = vmax.xlane.f32.xlu0 %v61
    %v162 = vpop.xlane.xlu0 %161
    %163 = vmax.xlane.f32.xlu0 %v62
    %v164 = vpop.xlane.xlu0 %163
    %165 = vmax.xlane.f32.xlu0 %v63
    %v166 = vpop.xlane.xlu0 %165
    %167 = vmax.xlane.f32.xlu0 %v64
    %v168 = vpop.xlane.xlu0 %167
    %169 = vmax.xlane.f32.xlu0 %v65
    %v170 = vpop.xlane.xlu0 %169
    %171 = vmax.xlane.f32.xlu0 %v66
    %v172 = vpop.xlane.xlu0 %171
    %173 = vmax.xlane.f32.xlu0 %v67
    %v174 = vpop.xlane.xlu0 %173
    %175 = vmax.xlane.f32.xlu0 %v68
    %v176 = vpop.xlane.xlu0 %175
    %177 = vmax.xlane.f32.xlu0 %v69
    %v178 = vpop.xlane.xlu0 %177
    %179 = vmax.xlane.f32.xlu0 %v70
    %v180 = vpop.xlane.xlu0 %179
    %181 = vmax.xlane.f32.xlu0 %v71
    %v182 = vpop.xlane.xlu0 %181
    %183 = vmax.xlane.f32.xlu0 %v72
    %v184 = vpop.xlane.xlu0 %183
    %185 = vmax.xlane.f32.xlu0 %v73
    %v186 = vpop.xlane.xlu0 %185
    %187 = vmax.xlane.f32.xlu0 %v74
    %v188 = vpop.xlane.xlu0 %187
    %189 = vmax.xlane.f32.xlu0 %v75
    %v190 = vpop.xlane.xlu0 %189
    %191 = vmax.xlane.f32.xlu0 %v76
    %v192 = vpop.xlane.xlu0 %191
    %193 = vmax.xlane.f32.xlu0 %v77
    %v194 = vpop.xlane.xlu0 %193
    %195 = vmax.xlane.f32.xlu0 %v78
    %v196 = vpop.xlane.xlu0 %195
    %197 = vmax.xlane.f32.xlu0 %v79
    %v198 = vpop.xlane.xlu0 %197
    %199 = vmax.xlane.f32.xlu0 %v80
    %v200 = vpop.xlane.xlu0 %199
    %201 = vmax.xlane.f32.xlu0 %v81
    %v202 = vpop.xlane.xlu0 %201
    %203 = vmax.xlane.f32.xlu0 %v82
    %v204 = vpop.xlane.xlu0 %203
    %205 = vmax.xlane.f32.xlu0 %v83
    %v206 = vpop.xlane.xlu0 %205
    %207 = vmax.xlane.f32.xlu0 %v84
    %v208 = vpop.xlane.xlu0 %207
    %209 = vmax.xlane.f32.xlu0 %v85
    %v210 = vpop.xlane.xlu0 %209
    %211 = vmax.xlane.f32.xlu0 %v86
    %v212 = vpop.xlane.xlu0 %211
    %213 = vmax.xlane.f32.xlu0 %v87
    %v214 = vpop.xlane.xlu0 %213
    %215 = vmax.xlane.f32.xlu0 %v88
    %v216 = vpop.xlane.xlu0 %215
    %v217 = vsub.f32 %v25, %v90
    %v218 = vsub.f32 %v26, %v92
    %v219 = vsub.f32 %v27, %v94
    %v220 = vsub.f32 %v28, %v96
    %v221 = vsub.f32 %v29, %v98
    %v222 = vsub.f32 %v30, %v100
    %v223 = vsub.f32 %v31, %v102
    %v224 = vsub.f32 %v32, %v104
    %v225 = vsub.f32 %v33, %v106
    %v226 = vsub.f32 %v34, %v108
    %v227 = vsub.f32 %v35, %v110
    %v228 = vsub.f32 %v36, %v112
    %v229 = vsub.f32 %v37, %v114
    %v230 = vsub.f32 %v38, %v116
    %v231 = vsub.f32 %v39, %v118
    %v232 = vsub.f32 %v40, %v120
    %v233 = vsub.f32 %v41, %v122
    %v234 = vsub.f32 %v42, %v124
    %v235 = vsub.f32 %v43, %v126
    %v236 = vsub.f32 %v44, %v128
    %v237 = vsub.f32 %v45, %v130
    %v238 = vsub.f32 %v46, %v132
    %v239 = vsub.f32 %v47, %v134
    %v240 = vsub.f32 %v48, %v136
    %v241 = vsub.f32 %v49, %v138
    %v242 = vsub.f32 %v50, %v140
    %v243 = vsub.f32 %v51, %v142
    %v244 = vsub.f32 %v52, %v144
    %v245 = vsub.f32 %v53, %v146
    %v246 = vsub.f32 %v54, %v148
    %v247 = vsub.f32 %v55, %v150
    %v248 = vsub.f32 %v56, %v152
    %v249 = vsub.f32 %v57, %v154
    %v250 = vsub.f32 %v58, %v156
    %v251 = vsub.f32 %v59, %v158
    %v252 = vsub.f32 %v60, %v160
    %v253 = vsub.f32 %v61, %v162
    %v254 = vsub.f32 %v62, %v164
    %v255 = vsub.f32 %v63, %v166
    %v256 = vsub.f32 %v64, %v168
    %v257 = vsub.f32 %v65, %v170
    %v258 = vsub.f32 %v66, %v172
    %v259 = vsub.f32 %v67, %v174
    %v260 = vsub.f32 %v68, %v176
    %v261 = vsub.f32 %v69, %v178
    %v262 = vsub.f32 %v70, %v180
    %v263 = vsub.f32 %v71, %v182
    %v264 = vsub.f32 %v72, %v184
    %v265 = vsub.f32 %v73, %v186
    %v266 = vsub.f32 %v74, %v188
    %v267 = vsub.f32 %v75, %v190
    %v268 = vsub.f32 %v76, %v192
    %v269 = vsub.f32 %v77, %v194
    %v270 = vsub.f32 %v78, %v196
    %v271 = vsub.f32 %v79, %v198
    %v272 = vsub.f32 %v80, %v200
    %v273 = vsub.f32 %v81, %v202
    %v274 = vsub.f32 %v82, %v204
    %v275 = vsub.f32 %v83, %v206
    %v276 = vsub.f32 %v84, %v208
    %v277 = vsub.f32 %v85, %v210
    %v278 = vsub.f32 %v86, %v212
    %v279 = vsub.f32 %v87, %v214
    %v280 = vsub.f32 %v88, %v216
    %v281 = vmul.f32 %v217, 1.442695
    %v282 = vpow.pop %v281
    %v283 = vmul.f32 %v218, 1.442695
    %v284 = vpow.pop %v283
    %v285 = vmul.f32 %v219, 1.442695
    %v286 = vpow.pop %v285
    %v287 = vmul.f32 %v220, 1.442695
    %v288 = vpow.pop %v287
    %v289 = vmul.f32 %v221, 1.442695
    %v290 = vpow.pop %v289
    %v291 = vmul.f32 %v222, 1.442695
    %v292 = vpow.pop %v291
    %v293 = vmul.f32 %v223, 1.442695
    %v294 = vpow.pop %v293
    %v295 = vmul.f32 %v224, 1.442695
    %v296 = vpow.pop %v295
    %v297 = vmul.f32 %v225, 1.442695
    %v298 = vpow.pop %v297
    %v299 = vmul.f32 %v226, 1.442695
    %v300 = vpow.pop %v299
    %v301 = vmul.f32 %v227, 1.442695
    %v302 = vpow.pop %v301
    %v303 = vmul.f32 %v228, 1.442695
    %v304 = vpow.pop %v303
    %v305 = vmul.f32 %v229, 1.442695
    %v306 = vpow.pop %v305
    %v307 = vmul.f32 %v230, 1.442695
    %v308 = vpow.pop %v307
    %v309 = vmul.f32 %v231, 1.442695
    %v310 = vpow.pop %v309
    %v311 = vmul.f32 %v232, 1.442695
    %v312 = vpow.pop %v311
    %v313 = vmul.f32 %v233, 1.442695
    %v314 = vpow.pop %v313
    %v315 = vmul.f32 %v234, 1.442695
    %v316 = vpow.pop %v315
    %v317 = vmul.f32 %v235, 1.442695
    %v318 = vpow.pop %v317
    %v319 = vmul.f32 %v236, 1.442695
    %v320 = vpow.pop %v319
    %v321 = vmul.f32 %v237, 1.442695
    %v322 = vpow.pop %v321
    %v323 = vmul.f32 %v238, 1.442695
    %v324 = vpow.pop %v323
    %v325 = vmul.f32 %v239, 1.442695
    %v326 = vpow.pop %v325
    %v327 = vmul.f32 %v240, 1.442695
    %v328 = vpow.pop %v327
    %v329 = vmul.f32 %v241, 1.442695
    %v330 = vpow.pop %v329
    %v331 = vmul.f32 %v242, 1.442695
    %v332 = vpow.pop %v331
    %v333 = vmul.f32 %v243, 1.442695
    %v334 = vpow.pop %v333
    %v335 = vmul.f32 %v244, 1.442695
    %v336 = vpow.pop %v335
    %v337 = vmul.f32 %v245, 1.442695
    %v338 = vpow.pop %v337
    %v339 = vmul.f32 %v246, 1.442695
    %v340 = vpow.pop %v339
    %v341 = vmul.f32 %v247, 1.442695
    %v342 = vpow.pop %v341
    %v343 = vmul.f32 %v248, 1.442695
    %v344 = vpow.pop %v343
    %v345 = vmul.f32 %v249, 1.442695
    %v346 = vpow.pop %v345
    %v347 = vmul.f32 %v250, 1.442695
    %v348 = vpow.pop %v347
    %v349 = vmul.f32 %v251, 1.442695
    %v350 = vpow.pop %v349
    %v351 = vmul.f32 %v252, 1.442695
    %v352 = vpow.pop %v351
    %v353 = vmul.f32 %v253, 1.442695
    %v354 = vpow.pop %v353
    %v355 = vmul.f32 %v254, 1.442695
    %v356 = vpow.pop %v355
    %v357 = vmul.f32 %v255, 1.442695
    %v358 = vpow.pop %v357
    %v359 = vmul.f32 %v256, 1.442695
    %v360 = vpow.pop %v359
    %v361 = vmul.f32 %v257, 1.442695
    %v362 = vpow.pop %v361
    %v363 = vmul.f32 %v258, 1.442695
    %v364 = vpow.pop %v363
    %v365 = vmul.f32 %v259, 1.442695
    %v366 = vpow.pop %v365
    %v367 = vmul.f32 %v260, 1.442695
    %v368 = vpow.pop %v367
    %v369 = vmul.f32 %v261, 1.442695
    %v370 = vpow.pop %v369
    %v371 = vmul.f32 %v262, 1.442695
    %v372 = vpow.pop %v371
    %v373 = vmul.f32 %v263, 1.442695
    %v374 = vpow.pop %v373
    %v375 = vmul.f32 %v264, 1.442695
    %v376 = vpow.pop %v375
    %v377 = vmul.f32 %v265, 1.442695
    %v378 = vpow.pop %v377
    %v379 = vmul.f32 %v266, 1.442695
    %v380 = vpow.pop %v379
    %v381 = vmul.f32 %v267, 1.442695
    %v382 = vpow.pop %v381
    %v383 = vmul.f32 %v268, 1.442695
    %v384 = vpow.pop %v383
    %v385 = vmul.f32 %v269, 1.442695
    %v386 = vpow.pop %v385
    %v387 = vmul.f32 %v270, 1.442695
    %v388 = vpow.pop %v387
    %v389 = vmul.f32 %v271, 1.442695
    %v390 = vpow.pop %v389
    %v391 = vmul.f32 %v272, 1.442695
    %v392 = vpow.pop %v391
    %v393 = vmul.f32 %v273, 1.442695
    %v394 = vpow.pop %v393
    %v395 = vmul.f32 %v274, 1.442695
    %v396 = vpow.pop %v395
    %v397 = vmul.f32 %v275, 1.442695
    %v398 = vpow.pop %v397
    %v399 = vmul.f32 %v276, 1.442695
    %v400 = vpow.pop %v399
    %v401 = vmul.f32 %v277, 1.442695
    %v402 = vpow.pop %v401
    %v403 = vmul.f32 %v278, 1.442695
    %v404 = vpow.pop %v403
    %v405 = vmul.f32 %v279, 1.442695
    %v406 = vpow.pop %v405
    %v407 = vmul.f32 %v280, 1.442695
    %v408 = vpow.pop %v407
    %409 = vadd.xlane.f32.xlu0 %v282
    %v410 = vpop.xlane.xlu0 %409
    %411 = vadd.xlane.f32.xlu0 %v284
    %v412 = vpop.xlane.xlu0 %411
    %413 = vadd.xlane.f32.xlu0 %v286
    %v414 = vpop.xlane.xlu0 %413
    %415 = vadd.xlane.f32.xlu0 %v288
    %v416 = vpop.xlane.xlu0 %415
    %417 = vadd.xlane.f32.xlu0 %v290
    %v418 = vpop.xlane.xlu0 %417
    %419 = vadd.xlane.f32.xlu0 %v292
    %v420 = vpop.xlane.xlu0 %419
    %421 = vadd.xlane.f32.xlu0 %v294
    %v422 = vpop.xlane.xlu0 %421
    %423 = vadd.xlane.f32.xlu0 %v296
    %v424 = vpop.xlane.xlu0 %423
    %425 = vadd.xlane.f32.xlu0 %v298
    %v426 = vpop.xlane.xlu0 %425
    %427 = vadd.xlane.f32.xlu0 %v300
    %v428 = vpop.xlane.xlu0 %427
    %429 = vadd.xlane.f32.xlu0 %v302
    %v430 = vpop.xlane.xlu0 %429
    %431 = vadd.xlane.f32.xlu0 %v304
    %v432 = vpop.xlane.xlu0 %431
    %433 = vadd.xlane.f32.xlu0 %v306
    %v434 = vpop.xlane.xlu0 %433
    %435 = vadd.xlane.f32.xlu0 %v308
    %v436 = vpop.xlane.xlu0 %435
    %437 = vadd.xlane.f32.xlu0 %v310
    %v438 = vpop.xlane.xlu0 %437
    %439 = vadd.xlane.f32.xlu0 %v312
    %v440 = vpop.xlane.xlu0 %439
    %441 = vadd.xlane.f32.xlu0 %v314
    %v442 = vpop.xlane.xlu0 %441
    %443 = vadd.xlane.f32.xlu0 %v316
    %v444 = vpop.xlane.xlu0 %443
    %445 = vadd.xlane.f32.xlu0 %v318
    %v446 = vpop.xlane.xlu0 %445
    %447 = vadd.xlane.f32.xlu0 %v320
    %v448 = vpop.xlane.xlu0 %447
    %449 = vadd.xlane.f32.xlu0 %v322
    %v450 = vpop.xlane.xlu0 %449
    %451 = vadd.xlane.f32.xlu0 %v324
    %v452 = vpop.xlane.xlu0 %451
    %453 = vadd.xlane.f32.xlu0 %v326
    %v454 = vpop.xlane.xlu0 %453
    %455 = vadd.xlane.f32.xlu0 %v328
    %v456 = vpop.xlane.xlu0 %455
    %457 = vadd.xlane.f32.xlu0 %v330
    %v458 = vpop.xlane.xlu0 %457
    %459 = vadd.xlane.f32.xlu0 %v332
    %v460 = vpop.xlane.xlu0 %459
    %461 = vadd.xlane.f32.xlu0 %v334
    %v462 = vpop.xlane.xlu0 %461
    %463 = vadd.xlane.f32.xlu0 %v336
    %v464 = vpop.xlane.xlu0 %463
    %465 = vadd.xlane.f32.xlu0 %v338
    %v466 = vpop.xlane.xlu0 %465
    %467 = vadd.xlane.f32.xlu0 %v340
    %v468 = vpop.xlane.xlu0 %467
    %469 = vadd.xlane.f32.xlu0 %v342
    %v470 = vpop.xlane.xlu0 %469
    %471 = vadd.xlane.f32.xlu0 %v344
    %v472 = vpop.xlane.xlu0 %471
    %473 = vadd.xlane.f32.xlu0 %v346
    %v474 = vpop.xlane.xlu0 %473
    %475 = vadd.xlane.f32.xlu0 %v348
    %v476 = vpop.xlane.xlu0 %475
    %477 = vadd.xlane.f32.xlu0 %v350
    %v478 = vpop.xlane.xlu0 %477
    %479 = vadd.xlane.f32.xlu0 %v352
    %v480 = vpop.xlane.xlu0 %479
    %481 = vadd.xlane.f32.xlu0 %v354
    %v482 = vpop.xlane.xlu0 %481
    %483 = vadd.xlane.f32.xlu0 %v356
    %v484 = vpop.xlane.xlu0 %483
    %485 = vadd.xlane.f32.xlu0 %v358
    %v486 = vpop.xlane.xlu0 %485
    %487 = vadd.xlane.f32.xlu0 %v360
    %v488 = vpop.xlane.xlu0 %487
    %489 = vadd.xlane.f32.xlu0 %v362
    %v490 = vpop.xlane.xlu0 %489
    %491 = vadd.xlane.f32.xlu0 %v364
    %v492 = vpop.xlane.xlu0 %491
    %493 = vadd.xlane.f32.xlu0 %v366
    %v494 = vpop.xlane.xlu0 %493
    %495 = vadd.xlane.f32.xlu0 %v368
    %v496 = vpop.xlane.xlu0 %495
    %497 = vadd.xlane.f32.xlu0 %v370
    %v498 = vpop.xlane.xlu0 %497
    %499 = vadd.xlane.f32.xlu0 %v372
    %v500 = vpop.xlane.xlu0 %499
    %501 = vadd.xlane.f32.xlu0 %v374
    %v502 = vpop.xlane.xlu0 %501
    %503 = vadd.xlane.f32.xlu0 %v376
    %v504 = vpop.xlane.xlu0 %503
    %505 = vadd.xlane.f32.xlu0 %v378
    %v506 = vpop.xlane.xlu0 %505
    %507 = vadd.xlane.f32.xlu0 %v380
    %v508 = vpop.xlane.xlu0 %507
    %509 = vadd.xlane.f32.xlu0 %v382
    %v510 = vpop.xlane.xlu0 %509
    %511 = vadd.xlane.f32.xlu0 %v384
    %v512 = vpop.xlane.xlu0 %511
    %513 = vadd.xlane.f32.xlu0 %v386
    %v514 = vpop.xlane.xlu0 %513
    %515 = vadd.xlane.f32.xlu0 %v388
    %v516 = vpop.xlane.xlu0 %515
    %517 = vadd.xlane.f32.xlu0 %v390
    %v518 = vpop.xlane.xlu0 %517
    %519 = vadd.xlane.f32.xlu0 %v392
    %v520 = vpop.xlane.xlu0 %519
    %521 = vadd.xlane.f32.xlu0 %v394
    %v522 = vpop.xlane.xlu0 %521
    %523 = vadd.xlane.f32.xlu0 %v396
    %v524 = vpop.xlane.xlu0 %523
    %525 = vadd.xlane.f32.xlu0 %v398
    %v526 = vpop.xlane.xlu0 %525
    %527 = vadd.xlane.f32.xlu0 %v400
    %v528 = vpop.xlane.xlu0 %527
    %529 = vadd.xlane.f32.xlu0 %v402
    %v530 = vpop.xlane.xlu0 %529
    %531 = vadd.xlane.f32.xlu0 %v404
    %v532 = vpop.xlane.xlu0 %531
    %533 = vadd.xlane.f32.xlu0 %v406
    %v534 = vpop.xlane.xlu0 %533
    %535 = vadd.xlane.f32.xlu0 %v408
    %v536 = vpop.xlane.xlu0 %535
    %v537 = vrcp.pop %v410
    %v538 = vmul.f32 1.0, %v537
    %v539 = vrcp.pop %v412
    %v540 = vmul.f32 1.0, %v539
    %v541 = vrcp.pop %v414
    %v542 = vmul.f32 1.0, %v541
    %v543 = vrcp.pop %v416
    %v544 = vmul.f32 1.0, %v543
    %v545 = vrcp.pop %v418
    %v546 = vmul.f32 1.0, %v545
    %v547 = vrcp.pop %v420
    %v548 = vmul.f32 1.0, %v547
    %v549 = vrcp.pop %v422
    %v550 = vmul.f32 1.0, %v549
    %v551 = vrcp.pop %v424
    %v552 = vmul.f32 1.0, %v551
    %v553 = vrcp.pop %v426
    %v554 = vmul.f32 1.0, %v553
    %v555 = vrcp.pop %v428
    %v556 = vmul.f32 1.0, %v555
    %v557 = vrcp.pop %v430
    %v558 = vmul.f32 1.0, %v557
    %v559 = vrcp.pop %v432
    %v560 = vmul.f32 1.0, %v559
    %v561 = vrcp.pop %v434
    %v562 = vmul.f32 1.0, %v561
    %v563 = vrcp.pop %v436
    %v564 = vmul.f32 1.0, %v563
    %v565 = vrcp.pop %v438
    %v566 = vmul.f32 1.0, %v565
    %v567 = vrcp.pop %v440
    %v568 = vmul.f32 1.0, %v567
    %v569 = vrcp.pop %v442
    %v570 = vmul.f32 1.0, %v569
    %v571 = vrcp.pop %v444
    %v572 = vmul.f32 1.0, %v571
    %v573 = vrcp.pop %v446
    %v574 = vmul.f32 1.0, %v573
    %v575 = vrcp.pop %v448
    %v576 = vmul.f32 1.0, %v575
    %v577 = vrcp.pop %v450
    %v578 = vmul.f32 1.0, %v577
    %v579 = vrcp.pop %v452
    %v580 = vmul.f32 1.0, %v579
    %v581 = vrcp.pop %v454
    %v582 = vmul.f32 1.0, %v581
    %v583 = vrcp.pop %v456
    %v584 = vmul.f32 1.0, %v583
    %v585 = vrcp.pop %v458
    %v586 = vmul.f32 1.0, %v585
    %v587 = vrcp.pop %v460
    %v588 = vmul.f32 1.0, %v587
    %v589 = vrcp.pop %v462
    %v590 = vmul.f32 1.0, %v589
    %v591 = vrcp.pop %v464
    %v592 = vmul.f32 1.0, %v591
    %v593 = vrcp.pop %v466
    %v594 = vmul.f32 1.0, %v593
    %v595 = vrcp.pop %v468
    %v596 = vmul.f32 1.0, %v595
    %v597 = vrcp.pop %v470
    %v598 = vmul.f32 1.0, %v597
    %v599 = vrcp.pop %v472
    %v600 = vmul.f32 1.0, %v599
    %v601 = vrcp.pop %v474
    %v602 = vmul.f32 1.0, %v601
    %v603 = vrcp.pop %v476
    %v604 = vmul.f32 1.0, %v603
    %v605 = vrcp.pop %v478
    %v606 = vmul.f32 1.0, %v605
    %v607 = vrcp.pop %v480
    %v608 = vmul.f32 1.0, %v607
    %v609 = vrcp.pop %v482
    %v610 = vmul.f32 1.0, %v609
    %v611 = vrcp.pop %v484
    %v612 = vmul.f32 1.0, %v611
    %v613 = vrcp.pop %v486
    %v614 = vmul.f32 1.0, %v613
    %v615 = vrcp.pop %v488
    %v616 = vmul.f32 1.0, %v615
    %v617 = vrcp.pop %v490
    %v618 = vmul.f32 1.0, %v617
    %v619 = vrcp.pop %v492
    %v620 = vmul.f32 1.0, %v619
    %v621 = vrcp.pop %v494
    %v622 = vmul.f32 1.0, %v621
    %v623 = vrcp.pop %v496
    %v624 = vmul.f32 1.0, %v623
    %v625 = vrcp.pop %v498
    %v626 = vmul.f32 1.0, %v625
    %v627 = vrcp.pop %v500
    %v628 = vmul.f32 1.0, %v627
    %v629 = vrcp.pop %v502
    %v630 = vmul.f32 1.0, %v629
    %v631 = vrcp.pop %v504
    %v632 = vmul.f32 1.0, %v631
    %v633 = vrcp.pop %v506
    %v634 = vmul.f32 1.0, %v633
    %v635 = vrcp.pop %v508
    %v636 = vmul.f32 1.0, %v635
    %v637 = vrcp.pop %v510
    %v638 = vmul.f32 1.0, %v637
    %v639 = vrcp.pop %v512
    %v640 = vmul.f32 1.0, %v639
    %v641 = vrcp.pop %v514
    %v642 = vmul.f32 1.0, %v641
    %v643 = vrcp.pop %v516
    %v644 = vmul.f32 1.0, %v643
    %v645 = vrcp.pop %v518
    %v646 = vmul.f32 1.0, %v645
    %v647 = vrcp.pop %v520
    %v648 = vmul.f32 1.0, %v647
    %v649 = vrcp.pop %v522
    %v650 = vmul.f32 1.0, %v649
    %v651 = vrcp.pop %v524
    %v652 = vmul.f32 1.0, %v651
    %v653 = vrcp.pop %v526
    %v654 = vmul.f32 1.0, %v653
    %v655 = vrcp.pop %v528
    %v656 = vmul.f32 1.0, %v655
    %v657 = vrcp.pop %v530
    %v658 = vmul.f32 1.0, %v657
    %v659 = vrcp.pop %v532
    %v660 = vmul.f32 1.0, %v659
    %v661 = vrcp.pop %v534
    %v662 = vmul.f32 1.0, %v661
    %v663 = vrcp.pop %v536
    %v664 = vmul.f32 1.0, %v663
    %v665 = vmul.f32 %v282, %v538
    %v666 = vmul.f32 %v284, %v540
    %v667 = vmul.f32 %v286, %v542
    %v668 = vmul.f32 %v288, %v544
    %v669 = vmul.f32 %v290, %v546
    %v670 = vmul.f32 %v292, %v548
    %v671 = vmul.f32 %v294, %v550
    %v672 = vmul.f32 %v296, %v552
    %v673 = vmul.f32 %v298, %v554
    %v674 = vmul.f32 %v300, %v556
    %v675 = vmul.f32 %v302, %v558
    %v676 = vmul.f32 %v304, %v560
    %v677 = vmul.f32 %v306, %v562
    %v678 = vmul.f32 %v308, %v564
    %v679 = vmul.f32 %v310, %v566
    %v680 = vmul.f32 %v312, %v568
    %v681 = vmul.f32 %v314, %v570
    %v682 = vmul.f32 %v316, %v572
    %v683 = vmul.f32 %v318, %v574
    %v684 = vmul.f32 %v320, %v576
    %v685 = vmul.f32 %v322, %v578
    %v686 = vmul.f32 %v324, %v580
    %v687 = vmul.f32 %v326, %v582
    %v688 = vmul.f32 %v328, %v584
    %v689 = vmul.f32 %v330, %v586
    %v690 = vmul.f32 %v332, %v588
    %v691 = vmul.f32 %v334, %v590
    %v692 = vmul.f32 %v336, %v592
    %v693 = vmul.f32 %v338, %v594
    %v694 = vmul.f32 %v340, %v596
    %v695 = vmul.f32 %v342, %v598
    %v696 = vmul.f32 %v344, %v600
    %v697 = vmul.f32 %v346, %v602
    %v698 = vmul.f32 %v348, %v604
    %v699 = vmul.f32 %v350, %v606
    %v700 = vmul.f32 %v352, %v608
    %v701 = vmul.f32 %v354, %v610
    %v702 = vmul.f32 %v356, %v612
    %v703 = vmul.f32 %v358, %v614
    %v704 = vmul.f32 %v360, %v616
    %v705 = vmul.f32 %v362, %v618
    %v706 = vmul.f32 %v364, %v620
    %v707 = vmul.f32 %v366, %v622
    %v708 = vmul.f32 %v368, %v624
    %v709 = vmul.f32 %v370, %v626
    %v710 = vmul.f32 %v372, %v628
    %v711 = vmul.f32 %v374, %v630
    %v712 = vmul.f32 %v376, %v632
    %v713 = vmul.f32 %v378, %v634
    %v714 = vmul.f32 %v380, %v636
    %v715 = vmul.f32 %v382, %v638
    %v716 = vmul.f32 %v384, %v640
    %v717 = vmul.f32 %v386, %v642
    %v718 = vmul.f32 %v388, %v644
    %v719 = vmul.f32 %v390, %v646
    %v720 = vmul.f32 %v392, %v648
    %v721 = vmul.f32 %v394, %v650
    %v722 = vmul.f32 %v396, %v652
    %v723 = vmul.f32 %v398, %v654
    %v724 = vmul.f32 %v400, %v656
    %v725 = vmul.f32 %v402, %v658
    %v726 = vmul.f32 %v404, %v660
    %v727 = vmul.f32 %v406, %v662
    %v728 = vmul.f32 %v408, %v664
    %v729 = vlaneseq
    %v730 = vshrl.u32 %v729, 7
    %v731 = vadd.s32 %v730, 8
    %v732 = vadd.s32 %v730, 16
    %v733 = vadd.s32 %v730, 24
    %v734 = vadd.s32 %v730, 32
    %v735 = vadd.s32 %v730, 40
    %v736 = vadd.s32 %v730, 48
    %v737 = vadd.s32 %v730, 56
    %v738 = vadd.s32 %v730, 64
    %v739 = vadd.s32 %v730, 72
    %v740 = vadd.s32 %v730, 80
    %v741 = vadd.s32 %v730, 88
    %v742 = vadd.s32 %v730, 96
    %v743 = vadd.s32 %v730, 104
    %v744 = vadd.s32 %v730, 112
    %v745 = vadd.s32 %v730, 120
    %v746 = vadd.s32 %v730, 128
    %v747 = vadd.s32 %v730, 136
    %v748 = vadd.s32 %v730, 144
    %v749 = vadd.s32 %v730, 152
    %v750 = vadd.s32 %v730, 160
    %v751 = vadd.s32 %v730, 168
    %v752 = vadd.s32 %v730, 176
    %v753 = vadd.s32 %v730, 184
    %v754 = vadd.s32 %v730, 192
    %v755 = vadd.s32 %v730, 200
    %v756 = vadd.s32 %v730, 208
    %v757 = vadd.s32 %v730, 216
    %v758 = vadd.s32 %v730, 224
    %v759 = vadd.s32 %v730, 232
    %v760 = vadd.s32 %v730, 240
    %v761 = vadd.s32 %v730, 248
    %v762 = vadd.s32 %v730, 256
    %v763 = vadd.s32 %v730, 264
    %v764 = vadd.s32 %v730, 272
    %v765 = vadd.s32 %v730, 280
    %v766 = vadd.s32 %v730, 288
    %v767 = vadd.s32 %v730, 296
    %v768 = vadd.s32 %v730, 304
    %v769 = vadd.s32 %v730, 312
    %v770 = vadd.s32 %v730, 320
    %v771 = vadd.s32 %v730, 328
    %v772 = vadd.s32 %v730, 336
    %v773 = vadd.s32 %v730, 344
    %v774 = vadd.s32 %v730, 352
    %v775 = vadd.s32 %v730, 360
    %v776 = vadd.s32 %v730, 368
    %v777 = vadd.s32 %v730, 376
    %v778 = vadd.s32 %v730, 384
    %v779 = vadd.s32 %v730, 392
    %v780 = vadd.s32 %v730, 400
    %v781 = vadd.s32 %v730, 408
    %v782 = vadd.s32 %v730, 416
    %v783 = vadd.s32 %v730, 424
    %v784 = vadd.s32 %v730, 432
    %v785 = vadd.s32 %v730, 440
    %v786 = vadd.s32 %v730, 448
    %v787 = vadd.s32 %v730, 456
    %v788 = vadd.s32 %v730, 464
    %v789 = vadd.s32 %v730, 472
    %v790 = vadd.s32 %v730, 480
    %v791 = vadd.s32 %v730, 488
    %v792 = vadd.s32 %v730, 496
    %v793 = vadd.s32 %v730, 504
    %v794 = vlaneseq
    %v795 = vand.u32 %v794, 127
    %s796 = smul.u32 0, 512
    %v797 = vstv %s796
    %v798 = vadd.s32 %v730, %v797
    %v799 = vadd.s32 %v731, %v797
    %v800 = vadd.s32 %v732, %v797
    %v801 = vadd.s32 %v733, %v797
    %v802 = vadd.s32 %v734, %v797
    %v803 = vadd.s32 %v735, %v797
    %v804 = vadd.s32 %v736, %v797
    %v805 = vadd.s32 %v737, %v797
    %v806 = vadd.s32 %v738, %v797
    %v807 = vadd.s32 %v739, %v797
    %v808 = vadd.s32 %v740, %v797
    %v809 = vadd.s32 %v741, %v797
    %v810 = vadd.s32 %v742, %v797
    %v811 = vadd.s32 %v743, %v797
    %v812 = vadd.s32 %v744, %v797
    %v813 = vadd.s32 %v745, %v797
    %v814 = vadd.s32 %v746, %v797
    %v815 = vadd.s32 %v747, %v797
    %v816 = vadd.s32 %v748, %v797
    %v817 = vadd.s32 %v749, %v797
    %v818 = vadd.s32 %v750, %v797
    %v819 = vadd.s32 %v751, %v797
    %v820 = vadd.s32 %v752, %v797
    %v821 = vadd.s32 %v753, %v797
    %v822 = vadd.s32 %v754, %v797
    %v823 = vadd.s32 %v755, %v797
    %v824 = vadd.s32 %v756, %v797
    %v825 = vadd.s32 %v757, %v797
    %v826 = vadd.s32 %v758, %v797
    %v827 = vadd.s32 %v759, %v797
    %v828 = vadd.s32 %v760, %v797
    %v829 = vadd.s32 %v761, %v797
    %v830 = vadd.s32 %v762, %v797
    %v831 = vadd.s32 %v763, %v797
    %v832 = vadd.s32 %v764, %v797
    %v833 = vadd.s32 %v765, %v797
    %v834 = vadd.s32 %v766, %v797
    %v835 = vadd.s32 %v767, %v797
    %v836 = vadd.s32 %v768, %v797
    %v837 = vadd.s32 %v769, %v797
    %v838 = vadd.s32 %v770, %v797
    %v839 = vadd.s32 %v771, %v797
    %v840 = vadd.s32 %v772, %v797
    %v841 = vadd.s32 %v773, %v797
    %v842 = vadd.s32 %v774, %v797
    %v843 = vadd.s32 %v775, %v797
    %v844 = vadd.s32 %v776, %v797
    %v845 = vadd.s32 %v777, %v797
    %v846 = vadd.s32 %v778, %v797
    %v847 = vadd.s32 %v779, %v797
    %v848 = vadd.s32 %v780, %v797
    %v849 = vadd.s32 %v781, %v797
    %v850 = vadd.s32 %v782, %v797
    %v851 = vadd.s32 %v783, %v797
    %v852 = vadd.s32 %v784, %v797
    %v853 = vadd.s32 %v785, %v797
    %v854 = vadd.s32 %v786, %v797
    %v855 = vadd.s32 %v787, %v797
    %v856 = vadd.s32 %v788, %v797
    %v857 = vadd.s32 %v789, %v797
    %v858 = vadd.s32 %v790, %v797
    %v859 = vadd.s32 %v791, %v797
    %v860 = vadd.s32 %v792, %v797
    %v861 = vadd.s32 %v793, %v797
    %v862 = vmul.u32 %v798, 128
    %v863 = vmul.u32 %v799, 128
    %v864 = vmul.u32 %v800, 128
    %v865 = vmul.u32 %v801, 128
    %v866 = vmul.u32 %v802, 128
    %v867 = vmul.u32 %v803, 128
    %v868 = vmul.u32 %v804, 128
    %v869 = vmul.u32 %v805, 128
    %v870 = vmul.u32 %v806, 128
    %v871 = vmul.u32 %v807, 128
    %v872 = vmul.u32 %v808, 128
    %v873 = vmul.u32 %v809, 128
    %v874 = vmul.u32 %v810, 128
    %v875 = vmul.u32 %v811, 128
    %v876 = vmul.u32 %v812, 128
    %v877 = vmul.u32 %v813, 128
    %v878 = vmul.u32 %v814, 128
    %v879 = vmul.u32 %v815, 128
    %v880 = vmul.u32 %v816, 128
    %v881 = vmul.u32 %v817, 128
    %v882 = vmul.u32 %v818, 128
    %v883 = vmul.u32 %v819, 128
    %v884 = vmul.u32 %v820, 128
    %v885 = vmul.u32 %v821, 128
    %v886 = vmul.u32 %v822, 128
    %v887 = vmul.u32 %v823, 128
    %v888 = vmul.u32 %v824, 128
    %v889 = vmul.u32 %v825, 128
    %v890 = vmul.u32 %v826, 128
    %v891 = vmul.u32 %v827, 128
    %v892 = vmul.u32 %v828, 128
    %v893 = vmul.u32 %v829, 128
    %v894 = vmul.u32 %v830, 128
    %v895 = vmul.u32 %v831, 128
    %v896 = vmul.u32 %v832, 128
    %v897 = vmul.u32 %v833, 128
    %v898 = vmul.u32 %v834, 128
    %v899 = vmul.u32 %v835, 128
    %v900 = vmul.u32 %v836, 128
    %v901 = vmul.u32 %v837, 128
    %v902 = vmul.u32 %v838, 128
    %v903 = vmul.u32 %v839, 128
    %v904 = vmul.u32 %v840, 128
    %v905 = vmul.u32 %v841, 128
    %v906 = vmul.u32 %v842, 128
    %v907 = vmul.u32 %v843, 128
    %v908 = vmul.u32 %v844, 128
    %v909 = vmul.u32 %v845, 128
    %v910 = vmul.u32 %v846, 128
    %v911 = vmul.u32 %v847, 128
    %v912 = vmul.u32 %v848, 128
    %v913 = vmul.u32 %v849, 128
    %v914 = vmul.u32 %v850, 128
    %v915 = vmul.u32 %v851, 128
    %v916 = vmul.u32 %v852, 128
    %v917 = vmul.u32 %v853, 128
    %v918 = vmul.u32 %v854, 128
    %v919 = vmul.u32 %v855, 128
    %v920 = vmul.u32 %v856, 128
    %v921 = vmul.u32 %v857, 128
    %v922 = vmul.u32 %v858, 128
    %v923 = vmul.u32 %v859, 128
    %v924 = vmul.u32 %v860, 128
    %v925 = vmul.u32 %v861, 128
    %v926 = vadd.s32 %v862, %v795
    %v927 = vadd.s32 %v863, %v795
    %v928 = vadd.s32 %v864, %v795
    %v929 = vadd.s32 %v865, %v795
    %v930 = vadd.s32 %v866, %v795
    %v931 = vadd.s32 %v867, %v795
    %v932 = vadd.s32 %v868, %v795
    %v933 = vadd.s32 %v869, %v795
    %v934 = vadd.s32 %v870, %v795
    %v935 = vadd.s32 %v871, %v795
    %v936 = vadd.s32 %v872, %v795
    %v937 = vadd.s32 %v873, %v795
    %v938 = vadd.s32 %v874, %v795
    %v939 = vadd.s32 %v875, %v795
    %v940 = vadd.s32 %v876, %v795
    %v941 = vadd.s32 %v877, %v795
    %v942 = vadd.s32 %v878, %v795
    %v943 = vadd.s32 %v879, %v795
    %v944 = vadd.s32 %v880, %v795
    %v945 = vadd.s32 %v881, %v795
    %v946 = vadd.s32 %v882, %v795
    %v947 = vadd.s32 %v883, %v795
    %v948 = vadd.s32 %v884, %v795
    %v949 = vadd.s32 %v885, %v795
    %v950 = vadd.s32 %v886, %v795
    %v951 = vadd.s32 %v887, %v795
    %v952 = vadd.s32 %v888, %v795
    %v953 = vadd.s32 %v889, %v795
    %v954 = vadd.s32 %v890, %v795
    %v955 = vadd.s32 %v891, %v795
    %v956 = vadd.s32 %v892, %v795
    %v957 = vadd.s32 %v893, %v795
    %v958 = vadd.s32 %v894, %v795
    %v959 = vadd.s32 %v895, %v795
    %v960 = vadd.s32 %v896, %v795
    %v961 = vadd.s32 %v897, %v795
    %v962 = vadd.s32 %v898, %v795
    %v963 = vadd.s32 %v899, %v795
    %v964 = vadd.s32 %v900, %v795
    %v965 = vadd.s32 %v901, %v795
    %v966 = vadd.s32 %v902, %v795
    %v967 = vadd.s32 %v903, %v795
    %v968 = vadd.s32 %v904, %v795
    %v969 = vadd.s32 %v905, %v795
    %v970 = vadd.s32 %v906, %v795
    %v971 = vadd.s32 %v907, %v795
    %v972 = vadd.s32 %v908, %v795
    %v973 = vadd.s32 %v909, %v795
    %v974 = vadd.s32 %v910, %v795
    %v975 = vadd.s32 %v911, %v795
    %v976 = vadd.s32 %v912, %v795
    %v977 = vadd.s32 %v913, %v795
    %v978 = vadd.s32 %v914, %v795
    %v979 = vadd.s32 %v915, %v795
    %v980 = vadd.s32 %v916, %v795
    %v981 = vadd.s32 %v917, %v795
    %v982 = vadd.s32 %v918, %v795
    %v983 = vadd.s32 %v919, %v795
    %v984 = vadd.s32 %v920, %v795
    %v985 = vadd.s32 %v921, %v795
    %v986 = vadd.s32 %v922, %v795
    %v987 = vadd.s32 %v923, %v795
    %v988 = vadd.s32 %v924, %v795
    %v989 = vadd.s32 %v925, %v795
    %s990 = sld [smem:[#allocation3]]
    %s991 = smul.u32 %s990, 2654435769
    %v992 = vstv %s991
    %v993 = vadd.s32 %v926, %v992
    %v994 = vadd.s32 %v927, %v992
    %v995 = vadd.s32 %v928, %v992
    %v996 = vadd.s32 %v929, %v992
    %v997 = vadd.s32 %v930, %v992
    %v998 = vadd.s32 %v931, %v992
    %v999 = vadd.s32 %v932, %v992
    %v1000 = vadd.s32 %v933, %v992
    %v1001 = vadd.s32 %v934, %v992
    %v1002 = vadd.s32 %v935, %v992
    %v1003 = vadd.s32 %v936, %v992
    %v1004 = vadd.s32 %v937, %v992
    %v1005 = vadd.s32 %v938, %v992
    %v1006 = vadd.s32 %v939, %v992
    %v1007 = vadd.s32 %v940, %v992
    %v1008 = vadd.s32 %v941, %v992
    %v1009 = vadd.s32 %v942, %v992
    %v1010 = vadd.s32 %v943, %v992
    %v1011 = vadd.s32 %v944, %v992
    %v1012 = vadd.s32 %v945, %v992
    %v1013 = vadd.s32 %v946, %v992
    %v1014 = vadd.s32 %v947, %v992
    %v1015 = vadd.s32 %v948, %v992
    %v1016 = vadd.s32 %v949, %v992
    %v1017 = vadd.s32 %v950, %v992
    %v1018 = vadd.s32 %v951, %v992
    %v1019 = vadd.s32 %v952, %v992
    %v1020 = vadd.s32 %v953, %v992
    %v1021 = vadd.s32 %v954, %v992
    %v1022 = vadd.s32 %v955, %v992
    %v1023 = vadd.s32 %v956, %v992
    %v1024 = vadd.s32 %v957, %v992
    %v1025 = vadd.s32 %v958, %v992
    %v1026 = vadd.s32 %v959, %v992
    %v1027 = vadd.s32 %v960, %v992
    %v1028 = vadd.s32 %v961, %v992
    %v1029 = vadd.s32 %v962, %v992
    %v1030 = vadd.s32 %v963, %v992
    %v1031 = vadd.s32 %v964, %v992
    %v1032 = vadd.s32 %v965, %v992
    %v1033 = vadd.s32 %v966, %v992
    %v1034 = vadd.s32 %v967, %v992
    %v1035 = vadd.s32 %v968, %v992
    %v1036 = vadd.s32 %v969, %v992
    %v1037 = vadd.s32 %v970, %v992
    %v1038 = vadd.s32 %v971, %v992
    %v1039 = vadd.s32 %v972, %v992
    %v1040 = vadd.s32 %v973, %v992
    %v1041 = vadd.s32 %v974, %v992
    %v1042 = vadd.s32 %v975, %v992
    %v1043 = vadd.s32 %v976, %v992
    %v1044 = vadd.s32 %v977, %v992
    %v1045 = vadd.s32 %v978, %v992
    %v1046 = vadd.s32 %v979, %v992
    %v1047 = vadd.s32 %v980, %v992
    %v1048 = vadd.s32 %v981, %v992
    %v1049 = vadd.s32 %v982, %v992
    %v1050 = vadd.s32 %v983, %v992
    %v1051 = vadd.s32 %v984, %v992
    %v1052 = vadd.s32 %v985, %v992
    %v1053 = vadd.s32 %v986, %v992
    %v1054 = vadd.s32 %v987, %v992
    %v1055 = vadd.s32 %v988, %v992
    %v1056 = vadd.s32 %v989, %v992
    %v1057 = vshrl.u32 %v993, 16
    %v1058 = vshrl.u32 %v994, 16
    %v1059 = vshrl.u32 %v995, 16
    %v1060 = vshrl.u32 %v996, 16
    %v1061 = vshrl.u32 %v997, 16
    %v1062 = vshrl.u32 %v998, 16
    %v1063 = vshrl.u32 %v999, 16
    %v1064 = vshrl.u32 %v1000, 16
    %v1065 = vshrl.u32 %v1001, 16
    %v1066 = vshrl.u32 %v1002, 16
    %v1067 = vshrl.u32 %v1003, 16
    %v1068 = vshrl.u32 %v1004, 16
    %v1069 = vshrl.u32 %v1005, 16
    %v1070 = vshrl.u32 %v1006, 16
    %v1071 = vshrl.u32 %v1007, 16
    %v1072 = vshrl.u32 %v1008, 16
    %v1073 = vshrl.u32 %v1009, 16
    %v1074 = vshrl.u32 %v1010, 16
    %v1075 = vshrl.u32 %v1011, 16
    %v1076 = vshrl.u32 %v1012, 16
    %v1077 = vshrl.u32 %v1013, 16
    %v1078 = vshrl.u32 %v1014, 16
    %v1079 = vshrl.u32 %v1015, 16
    %v1080 = vshrl.u32 %v1016, 16
    %v1081 = vshrl.u32 %v1017, 16
    %v1082 = vshrl.u32 %v1018, 16
    %v1083 = vshrl.u32 %v1019, 16
    %v1084 = vshrl.u32 %v1020, 16
    %v1085 = vshrl.u32 %v1021, 16
    %v1086 = vshrl.u32 %v1022, 16
    %v1087 = vshrl.u32 %v1023, 16
    %v1088 = vshrl.u32 %v1024, 16
    %v1089 = vshrl.u32 %v1025, 16
    %v1090 = vshrl.u32 %v1026, 16
    %v1091 = vshrl.u32 %v1027, 16
    %v1092 = vshrl.u32 %v1028, 16
    %v1093 = vshrl.u32 %v1029, 16
    %v1094 = vshrl.u32 %v1030, 16
    %v1095 = vshrl.u32 %v1031, 16
    %v1096 = vshrl.u32 %v1032, 16
    %v1097 = vshrl.u32 %v1033, 16
    %v1098 = vshrl.u32 %v1034, 16
    %v1099 = vshrl.u32 %v1035, 16
    %v1100 = vshrl.u32 %v1036, 16
    %v1101 = vshrl.u32 %v1037, 16
    %v1102 = vshrl.u32 %v1038, 16
    %v1103 = vshrl.u32 %v1039, 16
    %v1104 = vshrl.u32 %v1040, 16
    %v1105 = vshrl.u32 %v1041, 16
    %v1106 = vshrl.u32 %v1042, 16
    %v1107 = vshrl.u32 %v1043, 16
    %v1108 = vshrl.u32 %v1044, 16
    %v1109 = vshrl.u32 %v1045, 16
    %v1110 = vshrl.u32 %v1046, 16
    %v1111 = vshrl.u32 %v1047, 16
    %v1112 = vshrl.u32 %v1048, 16
    %v1113 = vshrl.u32 %v1049, 16
    %v1114 = vshrl.u32 %v1050, 16
    %v1115 = vshrl.u32 %v1051, 16
    %v1116 = vshrl.u32 %v1052, 16
    %v1117 = vshrl.u32 %v1053, 16
    %v1118 = vshrl.u32 %v1054, 16
    %v1119 = vshrl.u32 %v1055, 16
    %v1120 = vshrl.u32 %v1056, 16
    %v1121 = vxor.u32 %v993, %v1057
    %v1122 = vxor.u32 %v994, %v1058
    %v1123 = vxor.u32 %v995, %v1059
    %v1124 = vxor.u32 %v996, %v1060
    %v1125 = vxor.u32 %v997, %v1061
    %v1126 = vxor.u32 %v998, %v1062
    %v1127 = vxor.u32 %v999, %v1063
    %v1128 = vxor.u32 %v1000, %v1064
    %v1129 = vxor.u32 %v1001, %v1065
    %v1130 = vxor.u32 %v1002, %v1066
    %v1131 = vxor.u32 %v1003, %v1067
    %v1132 = vxor.u32 %v1004, %v1068
    %v1133 = vxor.u32 %v1005, %v1069
    %v1134 = vxor.u32 %v1006, %v1070
    %v1135 = vxor.u32 %v1007, %v1071
    %v1136 = vxor.u32 %v1008, %v1072
    %v1137 = vxor.u32 %v1009, %v1073
    %v1138 = vxor.u32 %v1010, %v1074
    %v1139 = vxor.u32 %v1011, %v1075
    %v1140 = vxor.u32 %v1012, %v1076
    %v1141 = vxor.u32 %v1013, %v1077
    %v1142 = vxor.u32 %v1014, %v1078
    %v1143 = vxor.u32 %v1015, %v1079
    %v1144 = vxor.u32 %v1016, %v1080
    %v1145 = vxor.u32 %v1017, %v1081
    %v1146 = vxor.u32 %v1018, %v1082
    %v1147 = vxor.u32 %v1019, %v1083
    %v1148 = vxor.u32 %v1020, %v1084
    %v1149 = vxor.u32 %v1021, %v1085
    %v1150 = vxor.u32 %v1022, %v1086
    %v1151 = vxor.u32 %v1023, %v1087
    %v1152 = vxor.u32 %v1024, %v1088
    %v1153 = vxor.u32 %v1025, %v1089
    %v1154 = vxor.u32 %v1026, %v1090
    %v1155 = vxor.u32 %v1027, %v1091
    %v1156 = vxor.u32 %v1028, %v1092
    %v1157 = vxor.u32 %v1029, %v1093
    %v1158 = vxor.u32 %v1030, %v1094
    %v1159 = vxor.u32 %v1031, %v1095
    %v1160 = vxor.u32 %v1032, %v1096
    %v1161 = vxor.u32 %v1033, %v1097
    %v1162 = vxor.u32 %v1034, %v1098
    %v1163 = vxor.u32 %v1035, %v1099
    %v1164 = vxor.u32 %v1036, %v1100
    %v1165 = vxor.u32 %v1037, %v1101
    %v1166 = vxor.u32 %v1038, %v1102
    %v1167 = vxor.u32 %v1039, %v1103
    %v1168 = vxor.u32 %v1040, %v1104
    %v1169 = vxor.u32 %v1041, %v1105
    %v1170 = vxor.u32 %v1042, %v1106
    %v1171 = vxor.u32 %v1043, %v1107
    %v1172 = vxor.u32 %v1044, %v1108
    %v1173 = vxor.u32 %v1045, %v1109
    %v1174 = vxor.u32 %v1046, %v1110
    %v1175 = vxor.u32 %v1047, %v1111
    %v1176 = vxor.u32 %v1048, %v1112
    %v1177 = vxor.u32 %v1049, %v1113
    %v1178 = vxor.u32 %v1050, %v1114
    %v1179 = vxor.u32 %v1051, %v1115
    %v1180 = vxor.u32 %v1052, %v1116
    %v1181 = vxor.u32 %v1053, %v1117
    %v1182 = vxor.u32 %v1054, %v1118
    %v1183 = vxor.u32 %v1055, %v1119
    %v1184 = vxor.u32 %v1056, %v1120
    %v1185 = vmul.u32 %v1121, 2146121005
    %v1186 = vmul.u32 %v1122, 2146121005
    %v1187 = vmul.u32 %v1123, 2146121005
    %v1188 = vmul.u32 %v1124, 2146121005
    %v1189 = vmul.u32 %v1125, 2146121005
    %v1190 = vmul.u32 %v1126, 2146121005
    %v1191 = vmul.u32 %v1127, 2146121005
    %v1192 = vmul.u32 %v1128, 2146121005
    %v1193 = vmul.u32 %v1129, 2146121005
    %v1194 = vmul.u32 %v1130, 2146121005
    %v1195 = vmul.u32 %v1131, 2146121005
    %v1196 = vmul.u32 %v1132, 2146121005
    %v1197 = vmul.u32 %v1133, 2146121005
    %v1198 = vmul.u32 %v1134, 2146121005
    %v1199 = vmul.u32 %v1135, 2146121005
    %v1200 = vmul.u32 %v1136, 2146121005
    %v1201 = vmul.u32 %v1137, 2146121005
    %v1202 = vmul.u32 %v1138, 2146121005
    %v1203 = vmul.u32 %v1139, 2146121005
    %v1204 = vmul.u32 %v1140, 2146121005
    %v1205 = vmul.u32 %v1141, 2146121005
    %v1206 = vmul.u32 %v1142, 2146121005
    %v1207 = vmul.u32 %v1143, 2146121005
    %v1208 = vmul.u32 %v1144, 2146121005
    %v1209 = vmul.u32 %v1145, 2146121005
    %v1210 = vmul.u32 %v1146, 2146121005
    %v1211 = vmul.u32 %v1147, 2146121005
    %v1212 = vmul.u32 %v1148, 2146121005
    %v1213 = vmul.u32 %v1149, 2146121005
    %v1214 = vmul.u32 %v1150, 2146121005
    %v1215 = vmul.u32 %v1151, 2146121005
    %v1216 = vmul.u32 %v1152, 2146121005
    %v1217 = vmul.u32 %v1153, 2146121005
    %v1218 = vmul.u32 %v1154, 2146121005
    %v1219 = vmul.u32 %v1155, 2146121005
    %v1220 = vmul.u32 %v1156, 2146121005
    %v1221 = vmul.u32 %v1157, 2146121005
    %v1222 = vmul.u32 %v1158, 2146121005
    %v1223 = vmul.u32 %v1159, 2146121005
    %v1224 = vmul.u32 %v1160, 2146121005
    %v1225 = vmul.u32 %v1161, 2146121005
    %v1226 = vmul.u32 %v1162, 2146121005
    %v1227 = vmul.u32 %v1163, 2146121005
    %v1228 = vmul.u32 %v1164, 2146121005
    %v1229 = vmul.u32 %v1165, 2146121005
    %v1230 = vmul.u32 %v1166, 2146121005
    %v1231 = vmul.u32 %v1167, 2146121005
    %v1232 = vmul.u32 %v1168, 2146121005
    %v1233 = vmul.u32 %v1169, 2146121005
    %v1234 = vmul.u32 %v1170, 2146121005
    %v1235 = vmul.u32 %v1171, 2146121005
    %v1236 = vmul.u32 %v1172, 2146121005
    %v1237 = vmul.u32 %v1173, 2146121005
    %v1238 = vmul.u32 %v1174, 2146121005
    %v1239 = vmul.u32 %v1175, 2146121005
    %v1240 = vmul.u32 %v1176, 2146121005
    %v1241 = vmul.u32 %v1177, 2146121005
    %v1242 = vmul.u32 %v1178, 2146121005
    %v1243 = vmul.u32 %v1179, 2146121005
    %v1244 = vmul.u32 %v1180, 2146121005
    %v1245 = vmul.u32 %v1181, 2146121005
    %v1246 = vmul.u32 %v1182, 2146121005
    %v1247 = vmul.u32 %v1183, 2146121005
    %v1248 = vmul.u32 %v1184, 2146121005
    %v1249 = vshrl.u32 %v1185, 15
    %v1250 = vshrl.u32 %v1186, 15
    %v1251 = vshrl.u32 %v1187, 15
    %v1252 = vshrl.u32 %v1188, 15
    %v1253 = vshrl.u32 %v1189, 15
    %v1254 = vshrl.u32 %v1190, 15
    %v1255 = vshrl.u32 %v1191, 15
    %v1256 = vshrl.u32 %v1192, 15
    %v1257 = vshrl.u32 %v1193, 15
    %v1258 = vshrl.u32 %v1194, 15
    %v1259 = vshrl.u32 %v1195, 15
    %v1260 = vshrl.u32 %v1196, 15
    %v1261 = vshrl.u32 %v1197, 15
    %v1262 = vshrl.u32 %v1198, 15
    %v1263 = vshrl.u32 %v1199, 15
    %v1264 = vshrl.u32 %v1200, 15
    %v1265 = vshrl.u32 %v1201, 15
    %v1266 = vshrl.u32 %v1202, 15
    %v1267 = vshrl.u32 %v1203, 15
    %v1268 = vshrl.u32 %v1204, 15
    %v1269 = vshrl.u32 %v1205, 15
    %v1270 = vshrl.u32 %v1206, 15
    %v1271 = vshrl.u32 %v1207, 15
    %v1272 = vshrl.u32 %v1208, 15
    %v1273 = vshrl.u32 %v1209, 15
    %v1274 = vshrl.u32 %v1210, 15
    %v1275 = vshrl.u32 %v1211, 15
    %v1276 = vshrl.u32 %v1212, 15
    %v1277 = vshrl.u32 %v1213, 15
    %v1278 = vshrl.u32 %v1214, 15
    %v1279 = vshrl.u32 %v1215, 15
    %v1280 = vshrl.u32 %v1216, 15
    %v1281 = vshrl.u32 %v1217, 15
    %v1282 = vshrl.u32 %v1218, 15
    %v1283 = vshrl.u32 %v1219, 15
    %v1284 = vshrl.u32 %v1220, 15
    %v1285 = vshrl.u32 %v1221, 15
    %v1286 = vshrl.u32 %v1222, 15
    %v1287 = vshrl.u32 %v1223, 15
    %v1288 = vshrl.u32 %v1224, 15
    %v1289 = vshrl.u32 %v1225, 15
    %v1290 = vshrl.u32 %v1226, 15
    %v1291 = vshrl.u32 %v1227, 15
    %v1292 = vshrl.u32 %v1228, 15
    %v1293 = vshrl.u32 %v1229, 15
    %v1294 = vshrl.u32 %v1230, 15
    %v1295 = vshrl.u32 %v1231, 15
    %v1296 = vshrl.u32 %v1232, 15
    %v1297 = vshrl.u32 %v1233, 15
    %v1298 = vshrl.u32 %v1234, 15
    %v1299 = vshrl.u32 %v1235, 15
    %v1300 = vshrl.u32 %v1236, 15
    %v1301 = vshrl.u32 %v1237, 15
    %v1302 = vshrl.u32 %v1238, 15
    %v1303 = vshrl.u32 %v1239, 15
    %v1304 = vshrl.u32 %v1240, 15
    %v1305 = vshrl.u32 %v1241, 15
    %v1306 = vshrl.u32 %v1242, 15
    %v1307 = vshrl.u32 %v1243, 15
    %v1308 = vshrl.u32 %v1244, 15
    %v1309 = vshrl.u32 %v1245, 15
    %v1310 = vshrl.u32 %v1246, 15
    %v1311 = vshrl.u32 %v1247, 15
    %v1312 = vshrl.u32 %v1248, 15
    %v1313 = vxor.u32 %v1185, %v1249
    %v1314 = vxor.u32 %v1186, %v1250
    %v1315 = vxor.u32 %v1187, %v1251
    %v1316 = vxor.u32 %v1188, %v1252
    %v1317 = vxor.u32 %v1189, %v1253
    %v1318 = vxor.u32 %v1190, %v1254
    %v1319 = vxor.u32 %v1191, %v1255
    %v1320 = vxor.u32 %v1192, %v1256
    %v1321 = vxor.u32 %v1193, %v1257
    %v1322 = vxor.u32 %v1194, %v1258
    %v1323 = vxor.u32 %v1195, %v1259
    %v1324 = vxor.u32 %v1196, %v1260
    %v1325 = vxor.u32 %v1197, %v1261
    %v1326 = vxor.u32 %v1198, %v1262
    %v1327 = vxor.u32 %v1199, %v1263
    %v1328 = vxor.u32 %v1200, %v1264
    %v1329 = vxor.u32 %v1201, %v1265
    %v1330 = vxor.u32 %v1202, %v1266
    %v1331 = vxor.u32 %v1203, %v1267
    %v1332 = vxor.u32 %v1204, %v1268
    %v1333 = vxor.u32 %v1205, %v1269
    %v1334 = vxor.u32 %v1206, %v1270
    %v1335 = vxor.u32 %v1207, %v1271
    %v1336 = vxor.u32 %v1208, %v1272
    %v1337 = vxor.u32 %v1209, %v1273
    %v1338 = vxor.u32 %v1210, %v1274
    %v1339 = vxor.u32 %v1211, %v1275
    %v1340 = vxor.u32 %v1212, %v1276
    %v1341 = vxor.u32 %v1213, %v1277
    %v1342 = vxor.u32 %v1214, %v1278
    %v1343 = vxor.u32 %v1215, %v1279
    %v1344 = vxor.u32 %v1216, %v1280
    %v1345 = vxor.u32 %v1217, %v1281
    %v1346 = vxor.u32 %v1218, %v1282
    %v1347 = vxor.u32 %v1219, %v1283
    %v1348 = vxor.u32 %v1220, %v1284
    %v1349 = vxor.u32 %v1221, %v1285
    %v1350 = vxor.u32 %v1222, %v1286
    %v1351 = vxor.u32 %v1223, %v1287
    %v1352 = vxor.u32 %v1224, %v1288
    %v1353 = vxor.u32 %v1225, %v1289
    %v1354 = vxor.u32 %v1226, %v1290
    %v1355 = vxor.u32 %v1227, %v1291
    %v1356 = vxor.u32 %v1228, %v1292
    %v1357 = vxor.u32 %v1229, %v1293
    %v1358 = vxor.u32 %v1230, %v1294
    %v1359 = vxor.u32 %v1231, %v1295
    %v1360 = vxor.u32 %v1232, %v1296
    %v1361 = vxor.u32 %v1233, %v1297
    %v1362 = vxor.u32 %v1234, %v1298
    %v1363 = vxor.u32 %v1235, %v1299
    %v1364 = vxor.u32 %v1236, %v1300
    %v1365 = vxor.u32 %v1237, %v1301
    %v1366 = vxor.u32 %v1238, %v1302
    %v1367 = vxor.u32 %v1239, %v1303
    %v1368 = vxor.u32 %v1240, %v1304
    %v1369 = vxor.u32 %v1241, %v1305
    %v1370 = vxor.u32 %v1242, %v1306
    %v1371 = vxor.u32 %v1243, %v1307
    %v1372 = vxor.u32 %v1244, %v1308
    %v1373 = vxor.u32 %v1245, %v1309
    %v1374 = vxor.u32 %v1246, %v1310
    %v1375 = vxor.u32 %v1247, %v1311
    %v1376 = vxor.u32 %v1248, %v1312
    %v1377 = vmul.u32 %v1313, 2221713035
    %v1378 = vmul.u32 %v1314, 2221713035
    %v1379 = vmul.u32 %v1315, 2221713035
    %v1380 = vmul.u32 %v1316, 2221713035
    %v1381 = vmul.u32 %v1317, 2221713035
    %v1382 = vmul.u32 %v1318, 2221713035
    %v1383 = vmul.u32 %v1319, 2221713035
    %v1384 = vmul.u32 %v1320, 2221713035
    %v1385 = vmul.u32 %v1321, 2221713035
    %v1386 = vmul.u32 %v1322, 2221713035
    %v1387 = vmul.u32 %v1323, 2221713035
    %v1388 = vmul.u32 %v1324, 2221713035
    %v1389 = vmul.u32 %v1325, 2221713035
    %v1390 = vmul.u32 %v1326, 2221713035
    %v1391 = vmul.u32 %v1327, 2221713035
    %v1392 = vmul.u32 %v1328, 2221713035
    %v1393 = vmul.u32 %v1329, 2221713035
    %v1394 = vmul.u32 %v1330, 2221713035
    %v1395 = vmul.u32 %v1331, 2221713035
    %v1396 = vmul.u32 %v1332, 2221713035
    %v1397 = vmul.u32 %v1333, 2221713035
    %v1398 = vmul.u32 %v1334, 2221713035
    %v1399 = vmul.u32 %v1335, 2221713035
    %v1400 = vmul.u32 %v1336, 2221713035
    %v1401 = vmul.u32 %v1337, 2221713035
    %v1402 = vmul.u32 %v1338, 2221713035
    %v1403 = vmul.u32 %v1339, 2221713035
    %v1404 = vmul.u32 %v1340, 2221713035
    %v1405 = vmul.u32 %v1341, 2221713035
    %v1406 = vmul.u32 %v1342, 2221713035
    %v1407 = vmul.u32 %v1343, 2221713035
    %v1408 = vmul.u32 %v1344, 2221713035
    %v1409 = vmul.u32 %v1345, 2221713035
    %v1410 = vmul.u32 %v1346, 2221713035
    %v1411 = vmul.u32 %v1347, 2221713035
    %v1412 = vmul.u32 %v1348, 2221713035
    %v1413 = vmul.u32 %v1349, 2221713035
    %v1414 = vmul.u32 %v1350, 2221713035
    %v1415 = vmul.u32 %v1351, 2221713035
    %v1416 = vmul.u32 %v1352, 2221713035
    %v1417 = vmul.u32 %v1353, 2221713035
    %v1418 = vmul.u32 %v1354, 2221713035
    %v1419 = vmul.u32 %v1355, 2221713035
    %v1420 = vmul.u32 %v1356, 2221713035
    %v1421 = vmul.u32 %v1357, 2221713035
    %v1422 = vmul.u32 %v1358, 2221713035
    %v1423 = vmul.u32 %v1359, 2221713035
    %v1424 = vmul.u32 %v1360, 2221713035
    %v1425 = vmul.u32 %v1361, 2221713035
    %v1426 = vmul.u32 %v1362, 2221713035
    %v1427 = vmul.u32 %v1363, 2221713035
    %v1428 = vmul.u32 %v1364, 2221713035
    %v1429 = vmul.u32 %v1365, 2221713035
    %v1430 = vmul.u32 %v1366, 2221713035
    %v1431 = vmul.u32 %v1367, 2221713035
    %v1432 = vmul.u32 %v1368, 2221713035
    %v1433 = vmul.u32 %v1369, 2221713035
    %v1434 = vmul.u32 %v1370, 2221713035
    %v1435 = vmul.u32 %v1371, 2221713035
    %v1436 = vmul.u32 %v1372, 2221713035
    %v1437 = vmul.u32 %v1373, 2221713035
    %v1438 = vmul.u32 %v1374, 2221713035
    %v1439 = vmul.u32 %v1375, 2221713035
    %v1440 = vmul.u32 %v1376, 2221713035
    %v1441 = vshrl.u32 %v1377, 16
    %v1442 = vshrl.u32 %v1378, 16
    %v1443 = vshrl.u32 %v1379, 16
    %v1444 = vshrl.u32 %v1380, 16
    %v1445 = vshrl.u32 %v1381, 16
    %v1446 = vshrl.u32 %v1382, 16
    %v1447 = vshrl.u32 %v1383, 16
    %v1448 = vshrl.u32 %v1384, 16
    %v1449 = vshrl.u32 %v1385, 16
    %v1450 = vshrl.u32 %v1386, 16
    %v1451 = vshrl.u32 %v1387, 16
    %v1452 = vshrl.u32 %v1388, 16
    %v1453 = vshrl.u32 %v1389, 16
    %v1454 = vshrl.u32 %v1390, 16
    %v1455 = vshrl.u32 %v1391, 16
    %v1456 = vshrl.u32 %v1392, 16
    %v1457 = vshrl.u32 %v1393, 16
    %v1458 = vshrl.u32 %v1394, 16
    %v1459 = vshrl.u32 %v1395, 16
    %v1460 = vshrl.u32 %v1396, 16
    %v1461 = vshrl.u32 %v1397, 16
    %v1462 = vshrl.u32 %v1398, 16
    %v1463 = vshrl.u32 %v1399, 16
    %v1464 = vshrl.u32 %v1400, 16
    %v1465 = vshrl.u32 %v1401, 16
    %v1466 = vshrl.u32 %v1402, 16
    %v1467 = vshrl.u32 %v1403, 16
    %v1468 = vshrl.u32 %v1404, 16
    %v1469 = vshrl.u32 %v1405, 16
    %v1470 = vshrl.u32 %v1406, 16
    %v1471 = vshrl.u32 %v1407, 16
    %v1472 = vshrl.u32 %v1408, 16
    %v1473 = vshrl.u32 %v1409, 16
    %v1474 = vshrl.u32 %v1410, 16
    %v1475 = vshrl.u32 %v1411, 16
    %v1476 = vshrl.u32 %v1412, 16
    %v1477 = vshrl.u32 %v1413, 16
    %v1478 = vshrl.u32 %v1414, 16
    %v1479 = vshrl.u32 %v1415, 16
    %v1480 = vshrl.u32 %v1416, 16
    %v1481 = vshrl.u32 %v1417, 16
    %v1482 = vshrl.u32 %v1418, 16
    %v1483 = vshrl.u32 %v1419, 16
    %v1484 = vshrl.u32 %v1420, 16
    %v1485 = vshrl.u32 %v1421, 16
    %v1486 = vshrl.u32 %v1422, 16
    %v1487 = vshrl.u32 %v1423, 16
    %v1488 = vshrl.u32 %v1424, 16
    %v1489 = vshrl.u32 %v1425, 16
    %v1490 = vshrl.u32 %v1426, 16
    %v1491 = vshrl.u32 %v1427, 16
    %v1492 = vshrl.u32 %v1428, 16
    %v1493 = vshrl.u32 %v1429, 16
    %v1494 = vshrl.u32 %v1430, 16
    %v1495 = vshrl.u32 %v1431, 16
    %v1496 = vshrl.u32 %v1432, 16
    %v1497 = vshrl.u32 %v1433, 16
    %v1498 = vshrl.u32 %v1434, 16
    %v1499 = vshrl.u32 %v1435, 16
    %v1500 = vshrl.u32 %v1436, 16
    %v1501 = vshrl.u32 %v1437, 16
    %v1502 = vshrl.u32 %v1438, 16
    %v1503 = vshrl.u32 %v1439, 16
    %v1504 = vshrl.u32 %v1440, 16
    %v1505 = vxor.u32 %v1377, %v1441
    %v1506 = vxor.u32 %v1378, %v1442
    %v1507 = vxor.u32 %v1379, %v1443
    %v1508 = vxor.u32 %v1380, %v1444
    %v1509 = vxor.u32 %v1381, %v1445
    %v1510 = vxor.u32 %v1382, %v1446
    %v1511 = vxor.u32 %v1383, %v1447
    %v1512 = vxor.u32 %v1384, %v1448
    %v1513 = vxor.u32 %v1385, %v1449
    %v1514 = vxor.u32 %v1386, %v1450
    %v1515 = vxor.u32 %v1387, %v1451
    %v1516 = vxor.u32 %v1388, %v1452
    %v1517 = vxor.u32 %v1389, %v1453
    %v1518 = vxor.u32 %v1390, %v1454
    %v1519 = vxor.u32 %v1391, %v1455
    %v1520 = vxor.u32 %v1392, %v1456
    %v1521 = vxor.u32 %v1393, %v1457
    %v1522 = vxor.u32 %v1394, %v1458
    %v1523 = vxor.u32 %v1395, %v1459
    %v1524 = vxor.u32 %v1396, %v1460
    %v1525 = vxor.u32 %v1397, %v1461
    %v1526 = vxor.u32 %v1398, %v1462
    %v1527 = vxor.u32 %v1399, %v1463
    %v1528 = vxor.u32 %v1400, %v1464
    %v1529 = vxor.u32 %v1401, %v1465
    %v1530 = vxor.u32 %v1402, %v1466
    %v1531 = vxor.u32 %v1403, %v1467
    %v1532 = vxor.u32 %v1404, %v1468
    %v1533 = vxor.u32 %v1405, %v1469
    %v1534 = vxor.u32 %v1406, %v1470
    %v1535 = vxor.u32 %v1407, %v1471
    %v1536 = vxor.u32 %v1408, %v1472
    %v1537 = vxor.u32 %v1409, %v1473
    %v1538 = vxor.u32 %v1410, %v1474
    %v1539 = vxor.u32 %v1411, %v1475
    %v1540 = vxor.u32 %v1412, %v1476
    %v1541 = vxor.u32 %v1413, %v1477
    %v1542 = vxor.u32 %v1414, %v1478
    %v1543 = vxor.u32 %v1415, %v1479
    %v1544 = vxor.u32 %v1416, %v1480
    %v1545 = vxor.u32 %v1417, %v1481
    %v1546 = vxor.u32 %v1418, %v1482
    %v1547 = vxor.u32 %v1419, %v1483
    %v1548 = vxor.u32 %v1420, %v1484
    %v1549 = vxor.u32 %v1421, %v1485
    %v1550 = vxor.u32 %v1422, %v1486
    %v1551 = vxor.u32 %v1423, %v1487
    %v1552 = vxor.u32 %v1424, %v1488
    %v1553 = vxor.u32 %v1425, %v1489
    %v1554 = vxor.u32 %v1426, %v1490
    %v1555 = vxor.u32 %v1427, %v1491
    %v1556 = vxor.u32 %v1428, %v1492
    %v1557 = vxor.u32 %v1429, %v1493
    %v1558 = vxor.u32 %v1430, %v1494
    %v1559 = vxor.u32 %v1431, %v1495
    %v1560 = vxor.u32 %v1432, %v1496
    %v1561 = vxor.u32 %v1433, %v1497
    %v1562 = vxor.u32 %v1434, %v1498
    %v1563 = vxor.u32 %v1435, %v1499
    %v1564 = vxor.u32 %v1436, %v1500
    %v1565 = vxor.u32 %v1437, %v1501
    %v1566 = vxor.u32 %v1438, %v1502
    %v1567 = vxor.u32 %v1439, %v1503
    %v1568 = vxor.u32 %v1440, %v1504
    %v1569 = vand.u32 %v1505, 16777215
    %v1570 = vand.u32 %v1506, 16777215
    %v1571 = vand.u32 %v1507, 16777215
    %v1572 = vand.u32 %v1508, 16777215
    %v1573 = vand.u32 %v1509, 16777215
    %v1574 = vand.u32 %v1510, 16777215
    %v1575 = vand.u32 %v1511, 16777215
    %v1576 = vand.u32 %v1512, 16777215
    %v1577 = vand.u32 %v1513, 16777215
    %v1578 = vand.u32 %v1514, 16777215
    %v1579 = vand.u32 %v1515, 16777215
    %v1580 = vand.u32 %v1516, 16777215
    %v1581 = vand.u32 %v1517, 16777215
    %v1582 = vand.u32 %v1518, 16777215
    %v1583 = vand.u32 %v1519, 16777215
    %v1584 = vand.u32 %v1520, 16777215
    %v1585 = vand.u32 %v1521, 16777215
    %v1586 = vand.u32 %v1522, 16777215
    %v1587 = vand.u32 %v1523, 16777215
    %v1588 = vand.u32 %v1524, 16777215
    %v1589 = vand.u32 %v1525, 16777215
    %v1590 = vand.u32 %v1526, 16777215
    %v1591 = vand.u32 %v1527, 16777215
    %v1592 = vand.u32 %v1528, 16777215
    %v1593 = vand.u32 %v1529, 16777215
    %v1594 = vand.u32 %v1530, 16777215
    %v1595 = vand.u32 %v1531, 16777215
    %v1596 = vand.u32 %v1532, 16777215
    %v1597 = vand.u32 %v1533, 16777215
    %v1598 = vand.u32 %v1534, 16777215
    %v1599 = vand.u32 %v1535, 16777215
    %v1600 = vand.u32 %v1536, 16777215
    %v1601 = vand.u32 %v1537, 16777215
    %v1602 = vand.u32 %v1538, 16777215
    %v1603 = vand.u32 %v1539, 16777215
    %v1604 = vand.u32 %v1540, 16777215
    %v1605 = vand.u32 %v1541, 16777215
    %v1606 = vand.u32 %v1542, 16777215
    %v1607 = vand.u32 %v1543, 16777215
    %v1608 = vand.u32 %v1544, 16777215
    %v1609 = vand.u32 %v1545, 16777215
    %v1610 = vand.u32 %v1546, 16777215
    %v1611 = vand.u32 %v1547, 16777215
    %v1612 = vand.u32 %v1548, 16777215
    %v1613 = vand.u32 %v1549, 16777215
    %v1614 = vand.u32 %v1550, 16777215
    %v1615 = vand.u32 %v1551, 16777215
    %v1616 = vand.u32 %v1552, 16777215
    %v1617 = vand.u32 %v1553, 16777215
    %v1618 = vand.u32 %v1554, 16777215
    %v1619 = vand.u32 %v1555, 16777215
    %v1620 = vand.u32 %v1556, 16777215
    %v1621 = vand.u32 %v1557, 16777215
    %v1622 = vand.u32 %v1558, 16777215
    %v1623 = vand.u32 %v1559, 16777215
    %v1624 = vand.u32 %v1560, 16777215
    %v1625 = vand.u32 %v1561, 16777215
    %v1626 = vand.u32 %v1562, 16777215
    %v1627 = vand.u32 %v1563, 16777215
    %v1628 = vand.u32 %v1564, 16777215
    %v1629 = vand.u32 %v1565, 16777215
    %v1630 = vand.u32 %v1566, 16777215
    %v1631 = vand.u32 %v1567, 16777215
    %v1632 = vand.u32 %v1568, 16777215
    %vm1633 = vcmp.ge.s32.totalorder %v1569, 1677721
    %vm1634 = vcmp.ge.s32.totalorder %v1570, 1677721
    %vm1635 = vcmp.ge.s32.totalorder %v1571, 1677721
    %vm1636 = vcmp.ge.s32.totalorder %v1572, 1677721
    %vm1637 = vcmp.ge.s32.totalorder %v1573, 1677721
    %vm1638 = vcmp.ge.s32.totalorder %v1574, 1677721
    %vm1639 = vcmp.ge.s32.totalorder %v1575, 1677721
    %vm1640 = vcmp.ge.s32.totalorder %v1576, 1677721
    %vm1641 = vcmp.ge.s32.totalorder %v1577, 1677721
    %vm1642 = vcmp.ge.s32.totalorder %v1578, 1677721
    %vm1643 = vcmp.ge.s32.totalorder %v1579, 1677721
    %vm1644 = vcmp.ge.s32.totalorder %v1580, 1677721
    %vm1645 = vcmp.ge.s32.totalorder %v1581, 1677721
    %vm1646 = vcmp.ge.s32.totalorder %v1582, 1677721
    %vm1647 = vcmp.ge.s32.totalorder %v1583, 1677721
    %vm1648 = vcmp.ge.s32.totalorder %v1584, 1677721
    %vm1649 = vcmp.ge.s32.totalorder %v1585, 1677721
    %vm1650 = vcmp.ge.s32.totalorder %v1586, 1677721
    %vm1651 = vcmp.ge.s32.totalorder %v1587, 1677721
    %vm1652 = vcmp.ge.s32.totalorder %v1588, 1677721
    %vm1653 = vcmp.ge.s32.totalorder %v1589, 1677721
    %vm1654 = vcmp.ge.s32.totalorder %v1590, 1677721
    %vm1655 = vcmp.ge.s32.totalorder %v1591, 1677721
    %vm1656 = vcmp.ge.s32.totalorder %v1592, 1677721
    %vm1657 = vcmp.ge.s32.totalorder %v1593, 1677721
    %vm1658 = vcmp.ge.s32.totalorder %v1594, 1677721
    %vm1659 = vcmp.ge.s32.totalorder %v1595, 1677721
    %vm1660 = vcmp.ge.s32.totalorder %v1596, 1677721
    %vm1661 = vcmp.ge.s32.totalorder %v1597, 1677721
    %vm1662 = vcmp.ge.s32.totalorder %v1598, 1677721
    %vm1663 = vcmp.ge.s32.totalorder %v1599, 1677721
    %vm1664 = vcmp.ge.s32.totalorder %v1600, 1677721
    %vm1665 = vcmp.ge.s32.totalorder %v1601, 1677721
    %vm1666 = vcmp.ge.s32.totalorder %v1602, 1677721
    %vm1667 = vcmp.ge.s32.totalorder %v1603, 1677721
    %vm1668 = vcmp.ge.s32.totalorder %v1604, 1677721
    %vm1669 = vcmp.ge.s32.totalorder %v1605, 1677721
    %vm1670 = vcmp.ge.s32.totalorder %v1606, 1677721
    %vm1671 = vcmp.ge.s32.totalorder %v1607, 1677721
    %vm1672 = vcmp.ge.s32.totalorder %v1608, 1677721
    %vm1673 = vcmp.ge.s32.totalorder %v1609, 1677721
    %vm1674 = vcmp.ge.s32.totalorder %v1610, 1677721
    %vm1675 = vcmp.ge.s32.totalorder %v1611, 1677721
    %vm1676 = vcmp.ge.s32.totalorder %v1612, 1677721
    %vm1677 = vcmp.ge.s32.totalorder %v1613, 1677721
    %vm1678 = vcmp.ge.s32.totalorder %v1614, 1677721
    %vm1679 = vcmp.ge.s32.totalorder %v1615, 1677721
    %vm1680 = vcmp.ge.s32.totalorder %v1616, 1677721
    %vm1681 = vcmp.ge.s32.totalorder %v1617, 1677721
    %vm1682 = vcmp.ge.s32.totalorder %v1618, 1677721
    %vm1683 = vcmp.ge.s32.totalorder %v1619, 1677721
    %vm1684 = vcmp.ge.s32.totalorder %v1620, 1677721
    %vm1685 = vcmp.ge.s32.totalorder %v1621, 1677721
    %vm1686 = vcmp.ge.s32.totalorder %v1622, 1677721
    %vm1687 = vcmp.ge.s32.totalorder %v1623, 1677721
    %vm1688 = vcmp.ge.s32.totalorder %v1624, 1677721
    %vm1689 = vcmp.ge.s32.totalorder %v1625, 1677721
    %vm1690 = vcmp.ge.s32.totalorder %v1626, 1677721
    %vm1691 = vcmp.ge.s32.totalorder %v1627, 1677721
    %vm1692 = vcmp.ge.s32.totalorder %v1628, 1677721
    %vm1693 = vcmp.ge.s32.totalorder %v1629, 1677721
    %vm1694 = vcmp.ge.s32.totalorder %v1630, 1677721
    %vm1695 = vcmp.ge.s32.totalorder %v1631, 1677721
    %vm1696 = vcmp.ge.s32.totalorder %v1632, 1677721
    %v1697 = vmul.f32 %v665, 1.1111112
    %v1698 = vmul.f32 %v666, 1.1111112
    %v1699 = vmul.f32 %v667, 1.1111112
    %v1700 = vmul.f32 %v668, 1.1111112
    %v1701 = vmul.f32 %v669, 1.1111112
    %v1702 = vmul.f32 %v670, 1.1111112
    %v1703 = vmul.f32 %v671, 1.1111112
    %v1704 = vmul.f32 %v672, 1.1111112
    %v1705 = vmul.f32 %v673, 1.1111112
    %v1706 = vmul.f32 %v674, 1.1111112
    %v1707 = vmul.f32 %v675, 1.1111112
    %v1708 = vmul.f32 %v676, 1.1111112
    %v1709 = vmul.f32 %v677, 1.1111112
    %v1710 = vmul.f32 %v678, 1.1111112
    %v1711 = vmul.f32 %v679, 1.1111112
    %v1712 = vmul.f32 %v680, 1.1111112
    %v1713 = vmul.f32 %v681, 1.1111112
    %v1714 = vmul.f32 %v682, 1.1111112
    %v1715 = vmul.f32 %v683, 1.1111112
    %v1716 = vmul.f32 %v684, 1.1111112
    %v1717 = vmul.f32 %v685, 1.1111112
    %v1718 = vmul.f32 %v686, 1.1111112
    %v1719 = vmul.f32 %v687, 1.1111112
    %v1720 = vmul.f32 %v688, 1.1111112
    %v1721 = vmul.f32 %v689, 1.1111112
    %v1722 = vmul.f32 %v690, 1.1111112
    %v1723 = vmul.f32 %v691, 1.1111112
    %v1724 = vmul.f32 %v692, 1.1111112
    %v1725 = vmul.f32 %v693, 1.1111112
    %v1726 = vmul.f32 %v694, 1.1111112
    %v1727 = vmul.f32 %v695, 1.1111112
    %v1728 = vmul.f32 %v696, 1.1111112
    %v1729 = vmul.f32 %v697, 1.1111112
    %v1730 = vmul.f32 %v698, 1.1111112
    %v1731 = vmul.f32 %v699, 1.1111112
    %v1732 = vmul.f32 %v700, 1.1111112
    %v1733 = vmul.f32 %v701, 1.1111112
    %v1734 = vmul.f32 %v702, 1.1111112
    %v1735 = vmul.f32 %v703, 1.1111112
    %v1736 = vmul.f32 %v704, 1.1111112
    %v1737 = vmul.f32 %v705, 1.1111112
    %v1738 = vmul.f32 %v706, 1.1111112
    %v1739 = vmul.f32 %v707, 1.1111112
    %v1740 = vmul.f32 %v708, 1.1111112
    %v1741 = vmul.f32 %v709, 1.1111112
    %v1742 = vmul.f32 %v710, 1.1111112
    %v1743 = vmul.f32 %v711, 1.1111112
    %v1744 = vmul.f32 %v712, 1.1111112
    %v1745 = vmul.f32 %v713, 1.1111112
    %v1746 = vmul.f32 %v714, 1.1111112
    %v1747 = vmul.f32 %v715, 1.1111112
    %v1748 = vmul.f32 %v716, 1.1111112
    %v1749 = vmul.f32 %v717, 1.1111112
    %v1750 = vmul.f32 %v718, 1.1111112
    %v1751 = vmul.f32 %v719, 1.1111112
    %v1752 = vmul.f32 %v720, 1.1111112
    %v1753 = vmul.f32 %v721, 1.1111112
    %v1754 = vmul.f32 %v722, 1.1111112
    %v1755 = vmul.f32 %v723, 1.1111112
    %v1756 = vmul.f32 %v724, 1.1111112
    %v1757 = vmul.f32 %v725, 1.1111112
    %v1758 = vmul.f32 %v726, 1.1111112
    %v1759 = vmul.f32 %v727, 1.1111112
    %v1760 = vmul.f32 %v728, 1.1111112
    %v1761 = vsel %vm1633, %v1697, 0.0
    %v1762 = vsel %vm1634, %v1698, 0.0
    %v1763 = vsel %vm1635, %v1699, 0.0
    %v1764 = vsel %vm1636, %v1700, 0.0
    %v1765 = vsel %vm1637, %v1701, 0.0
    %v1766 = vsel %vm1638, %v1702, 0.0
    %v1767 = vsel %vm1639, %v1703, 0.0
    %v1768 = vsel %vm1640, %v1704, 0.0
    %v1769 = vsel %vm1641, %v1705, 0.0
    %v1770 = vsel %vm1642, %v1706, 0.0
    %v1771 = vsel %vm1643, %v1707, 0.0
    %v1772 = vsel %vm1644, %v1708, 0.0
    %v1773 = vsel %vm1645, %v1709, 0.0
    %v1774 = vsel %vm1646, %v1710, 0.0
    %v1775 = vsel %vm1647, %v1711, 0.0
    %v1776 = vsel %vm1648, %v1712, 0.0
    %v1777 = vsel %vm1649, %v1713, 0.0
    %v1778 = vsel %vm1650, %v1714, 0.0
    %v1779 = vsel %vm1651, %v1715, 0.0
    %v1780 = vsel %vm1652, %v1716, 0.0
    %v1781 = vsel %vm1653, %v1717, 0.0
    %v1782 = vsel %vm1654, %v1718, 0.0
    %v1783 = vsel %vm1655, %v1719, 0.0
    %v1784 = vsel %vm1656, %v1720, 0.0
    %v1785 = vsel %vm1657, %v1721, 0.0
    %v1786 = vsel %vm1658, %v1722, 0.0
    %v1787 = vsel %vm1659, %v1723, 0.0
    %v1788 = vsel %vm1660, %v1724, 0.0
    %v1789 = vsel %vm1661, %v1725, 0.0
    %v1790 = vsel %vm1662, %v1726, 0.0
    %v1791 = vsel %vm1663, %v1727, 0.0
    %v1792 = vsel %vm1664, %v1728, 0.0
    %v1793 = vsel %vm1665, %v1729, 0.0
    %v1794 = vsel %vm1666, %v1730, 0.0
    %v1795 = vsel %vm1667, %v1731, 0.0
    %v1796 = vsel %vm1668, %v1732, 0.0
    %v1797 = vsel %vm1669, %v1733, 0.0
    %v1798 = vsel %vm1670, %v1734, 0.0
    %v1799 = vsel %vm1671, %v1735, 0.0
    %v1800 = vsel %vm1672, %v1736, 0.0
    %v1801 = vsel %vm1673, %v1737, 0.0
    %v1802 = vsel %vm1674, %v1738, 0.0
    %v1803 = vsel %vm1675, %v1739, 0.0
    %v1804 = vsel %vm1676, %v1740, 0.0
    %v1805 = vsel %vm1677, %v1741, 0.0
    %v1806 = vsel %vm1678, %v1742, 0.0
    %v1807 = vsel %vm1679, %v1743, 0.0
    %v1808 = vsel %vm1680, %v1744, 0.0
    %v1809 = vsel %vm1681, %v1745, 0.0
    %v1810 = vsel %vm1682, %v1746, 0.0
    %v1811 = vsel %vm1683, %v1747, 0.0
    %v1812 = vsel %vm1684, %v1748, 0.0
    %v1813 = vsel %vm1685, %v1749, 0.0
    %v1814 = vsel %vm1686, %v1750, 0.0
    %v1815 = vsel %vm1687, %v1751, 0.0
    %v1816 = vsel %vm1688, %v1752, 0.0
    %v1817 = vsel %vm1689, %v1753, 0.0
    %v1818 = vsel %vm1690, %v1754, 0.0
    %v1819 = vsel %vm1691, %v1755, 0.0
    %v1820 = vsel %vm1692, %v1756, 0.0
    %v1821 = vsel %vm1693, %v1757, 0.0
    %v1822 = vsel %vm1694, %v1758, 0.0
    %v1823 = vsel %vm1695, %v1759, 0.0
    %v1824 = vsel %vm1696, %v1760, 0.0
    %1825 = vst [vmem:[#allocation7] sm:$0xff] %v1761
    %1826 = vst [vmem:[#allocation7 + $0x8] sm:$0xff] %v1762
    %1827 = vst [vmem:[#allocation7 + $0x10] sm:$0xff] %v1763
    %1828 = vst [vmem:[#allocation7 + $0x18] sm:$0xff] %v1764
    %1829 = vst [vmem:[#allocation7 + $0x20] sm:$0xff] %v1765
    %1830 = vst [vmem:[#allocation7 + $0x28] sm:$0xff] %v1766
    %1831 = vst [vmem:[#allocation7 + $0x30] sm:$0xff] %v1767
    %1832 = vst [vmem:[#allocation7 + $0x38] sm:$0xff] %v1768
    %1833 = vst [vmem:[#allocation7 + $0x40] sm:$0xff] %v1769
    %1834 = vst [vmem:[#allocation7 + $0x48] sm:$0xff] %v1770
    %1835 = vst [vmem:[#allocation7 + $0x50] sm:$0xff] %v1771
    %1836 = vst [vmem:[#allocation7 + $0x58] sm:$0xff] %v1772
    %1837 = vst [vmem:[#allocation7 + $0x60] sm:$0xff] %v1773
    %1838 = vst [vmem:[#allocation7 + $0x68] sm:$0xff] %v1774
    %1839 = vst [vmem:[#allocation7 + $0x70] sm:$0xff] %v1775
    %1840 = vst [vmem:[#allocation7 + $0x78] sm:$0xff] %v1776
    %1841 = vst [vmem:[#allocation7 + $0x80] sm:$0xff] %v1777
    %1842 = vst [vmem:[#allocation7 + $0x88] sm:$0xff] %v1778
    %1843 = vst [vmem:[#allocation7 + $0x90] sm:$0xff] %v1779
    %1844 = vst [vmem:[#allocation7 + $0x98] sm:$0xff] %v1780
    %1845 = vst [vmem:[#allocation7 + $0xa0] sm:$0xff] %v1781
    %1846 = vst [vmem:[#allocation7 + $0xa8] sm:$0xff] %v1782
    %1847 = vst [vmem:[#allocation7 + $0xb0] sm:$0xff] %v1783
    %1848 = vst [vmem:[#allocation7 + $0xb8] sm:$0xff] %v1784
    %1849 = vst [vmem:[#allocation7 + $0xc0] sm:$0xff] %v1785
    %1850 = vst [vmem:[#allocation7 + $0xc8] sm:$0xff] %v1786
    %1851 = vst [vmem:[#allocation7 + $0xd0] sm:$0xff] %v1787
    %1852 = vst [vmem:[#allocation7 + $0xd8] sm:$0xff] %v1788
    %1853 = vst [vmem:[#allocation7 + $0xe0] sm:$0xff] %v1789
    %1854 = vst [vmem:[#allocation7 + $0xe8] sm:$0xff] %v1790
    %1855 = vst [vmem:[#allocation7 + $0xf0] sm:$0xff] %v1791
    %1856 = vst [vmem:[#allocation7 + $0xf8] sm:$0xff] %v1792
    %1857 = vst [vmem:[#allocation7 + $0x100] sm:$0xff] %v1793
    %1858 = vst [vmem:[#allocation7 + $0x108] sm:$0xff] %v1794
    %1859 = vst [vmem:[#allocation7 + $0x110] sm:$0xff] %v1795
    %1860 = vst [vmem:[#allocation7 + $0x118] sm:$0xff] %v1796
    %1861 = vst [vmem:[#allocation7 + $0x120] sm:$0xff] %v1797
    %1862 = vst [vmem:[#allocation7 + $0x128] sm:$0xff] %v1798
    %1863 = vst [vmem:[#allocation7 + $0x130] sm:$0xff] %v1799
    %1864 = vst [vmem:[#allocation7 + $0x138] sm:$0xff] %v1800
    %1865 = vst [vmem:[#allocation7 + $0x140] sm:$0xff] %v1801
    %1866 = vst [vmem:[#allocation7 + $0x148] sm:$0xff] %v1802
    %1867 = vst [vmem:[#allocation7 + $0x150] sm:$0xff] %v1803
    %1868 = vst [vmem:[#allocation7 + $0x158] sm:$0xff] %v1804
    %1869 = vst [vmem:[#allocation7 + $0x160] sm:$0xff] %v1805
    %1870 = vst [vmem:[#allocation7 + $0x168] sm:$0xff] %v1806
    %1871 = vst [vmem:[#allocation7 + $0x170] sm:$0xff] %v1807
    %1872 = vst [vmem:[#allocation7 + $0x178] sm:$0xff] %v1808
    %1873 = vst [vmem:[#allocation7 + $0x180] sm:$0xff] %v1809
    %1874 = vst [vmem:[#allocation7 + $0x188] sm:$0xff] %v1810
    %1875 = vst [vmem:[#allocation7 + $0x190] sm:$0xff] %v1811
    %1876 = vst [vmem:[#allocation7 + $0x198] sm:$0xff] %v1812
    %1877 = vst [vmem:[#allocation7 + $0x1a0] sm:$0xff] %v1813
    %1878 = vst [vmem:[#allocation7 + $0x1a8] sm:$0xff] %v1814
    %1879 = vst [vmem:[#allocation7 + $0x1b0] sm:$0xff] %v1815
    %1880 = vst [vmem:[#allocation7 + $0x1b8] sm:$0xff] %v1816
    %1881 = vst [vmem:[#allocation7 + $0x1c0] sm:$0xff] %v1817
    %1882 = vst [vmem:[#allocation7 + $0x1c8] sm:$0xff] %v1818
    %1883 = vst [vmem:[#allocation7 + $0x1d0] sm:$0xff] %v1819
    %1884 = vst [vmem:[#allocation7 + $0x1d8] sm:$0xff] %v1820
    %1885 = vst [vmem:[#allocation7 + $0x1e0] sm:$0xff] %v1821
    %1886 = vst [vmem:[#allocation7 + $0x1e8] sm:$0xff] %v1822
    %1887 = vst [vmem:[#allocation7 + $0x1f0] sm:$0xff] %v1823
    %1888 = vst [vmem:[#allocation7 + $0x1f8] sm:$0xff] %v1824
    // Predicated region
    $region10: #{tpu_custom_call.1} parent=1 // pred_check
      _
    $region11: #{tpu_custom_call.1} parent=1 // pred_check_branch
      %1890 = sbr.rel (0) target = $region13
    $region12: #{tpu_custom_call.1} parent=1 // pred_region
      %s1892 = ssub.s32 8192, 8192
      %1893 = vsyncadd [#allocation6], %s1892
      %s1894 = sshll.u32 [#allocation7], 4
      %s1895 = int_to_ptr.vmem [resolvable:$true] %s1894
      %1900 = dma.vmem_to_hbm [thread:$0]  %s1895, 8192, %s2, [#allocation6], 128, 128, 8
    $region13: #{tpu_custom_call.1} parent=1 // pred_fallthru
      _
    // Predicated region
    $region14: #{tpu_custom_call.1} parent=1 // pred_check
      _
    $region15: #{tpu_custom_call.1} parent=1 // pred_check_branch
      %1902 = sbr.rel (0) target = $region17
    $region16: #{tpu_custom_call.1} parent=1 // pred_region
      %1903 = dma.done [#allocation6], 8192
    $region17: #{tpu_custom_call.1} parent=1 // pred_fallthru
      _
    %1904 = vsyncpa [#allocation5], 1
    %1905 = vsyncpa [#allocation6], 1

</llo_original>
